<compile_context>
chip_gen: v7x
topology: tpu7x:2x2x1
jax: 0.10.0
libtpu: 0.0.40
codegen_flags: <defaults>
</compile_context>

<pallas_src>
import numpy as np
import jax
import jax.numpy as jnp
from jax.experimental import pallas as pl
from jax.experimental.pallas import tpu as pltpu

LEAKY_SLOPE = 0.01  # torch.nn.LeakyReLU default negative_slope


def _round_up(x, m):
    return -(-x // m) * m


# ---------------------------------------------------------------------------
# Static window-start schedules (padding=0)
# ---------------------------------------------------------------------------
def regular_starts(length, k, stride):
    return list(range(0, length - k + 1, stride))


def alternating_starts(length, k, s1, s2):
    starts, pos, i = [], 0, 0
    while pos + k <= length:
        starts.append(pos)
        pos += s1 if i % 2 == 0 else s2
        i += 1
    return starts


# ---------------------------------------------------------------------------
# Selector construction (trace time)
# ---------------------------------------------------------------------------
def _row_gather_cat(h_starts, kh, hin):
    """0/1 matrix [kh*OHpad, hin]; row dh*OHpad + r selects input row h_starts[r]+dh.

    OH is padded to a multiple of 8 so per-dh slices of the result stay
    sublane-aligned; padded rows are zero and never referenced downstream.
    """
    oh = len(h_starts)
    oh_pad = _round_up(oh, 8)
    m = np.zeros((kh * oh_pad, hin), np.float32)
    for dh in range(kh):
        for r, s in enumerate(h_starts):
            m[dh * oh_pad + r, s + dh] = 1.0
    return jnp.asarray(m)


def _col_weight_fold(w, w_starts, win):
    """Fold conv weights into the column-gather selector.

    Returns swc of shape [kh, Cin*Win, Cout*OW] with
      swc[dh, ci*Win + w_starts[c] + dw, co*OW + c] = w[co, ci, dh, dw]
    so (row-gathered, lane-packed activation) @ swc[dh] performs column gather,
    weight multiply and the (ci, dw) contraction in a single MXU matmul.
    """
    cout, cin, kh, kw = w.shape
    ow = len(w_starts)
    sel = np.zeros((kw, win, ow), np.float32)
    for dw in range(kw):
        for c, s in enumerate(w_starts):
            sel[dw, s + dw, c] = 1.0
    sel = jnp.asarray(sel)
    swc = jnp.einsum("ochd,dwq->hcwoq", w, sel)       # [kh, cin, win, cout, ow]
    return swc.reshape(kh, cin * win, cout * ow)


# ---------------------------------------------------------------------------
# Fused 3-layer Pallas kernel (B_blk batch elements per grid step)
# ---------------------------------------------------------------------------
def _fused_terrain_kernel(x_ref,
                          sh1_ref, swc1_ref, b1_ref,
                          sh2_ref, swc2_ref, b2_ref,
                          sh3_ref, swc3_ref, b3_ref,
                          o_ref):
    # x_ref : (B_blk, H, C0*W)        lane-packed input planes       VMEM
    # sh*   : (kh*OHpad, Hin)  f32    concatenated 0/1 row selectors VMEM
    # swc*  : (kh, Cin*Win, Cout*OW)  weight-folded column selectors VMEM
    # b*    : (1, Cout*OW) f32        lane-packed bias               VMEM
    # o_ref : (B_blk, OH3, Cend*OW3)  lane-packed output             VMEM

    def layer(p, sh_ref, swc_ref, b_ref):
        kh = swc_ref.shape[0]
        oh_pad = sh_ref.shape[0] // kh
        # Row gather for all taps and all channels in ONE MXU matmul.
        rg = jnp.dot(sh_ref[...], p, preferred_element_type=jnp.float32)
        # Column gather + weight multiply + (ci, dw) contraction on the MXU;
        # accumulate over dh immediately (tight live ranges, no patch lists).
        acc = None
        for dh in range(kh):
            blk = rg[dh * oh_pad:(dh + 1) * oh_pad, :]
            term = jnp.dot(blk, swc_ref[dh], preferred_element_type=jnp.float32)
            acc = term if acc is None else acc + term
        acc = acc + b_ref[...]
        return jnp.where(acc >= 0, acc, LEAKY_SLOPE * acc)

    b_blk = x_ref.shape[0]
    oh3 = o_ref.shape[1]
    for b in range(b_blk):
        a = x_ref[b]                                  # [H, C0*W]
        a = layer(a, sh1_ref, swc1_ref, b1_ref)       # [OH1pad, C1*OW1]
        a = layer(a, sh2_ref, swc2_ref, b2_ref)       # [OH2pad, C2*OW2]
        a = layer(a, sh3_ref, swc3_ref, b3_ref)       # [OH3pad, Cend*OW3]
        o_ref[b, :, :] = a[:oh3, :].astype(o_ref.dtype)


# ---------------------------------------------------------------------------
# Wrapper
# ---------------------------------------------------------------------------
def _pick_batch_block(n, max_blk=8):
    for b in range(min(n, max_blk), 0, -1):
        if n % b == 0:
            return b
    return 1


def terrain_downsample_alternating(x, params):
    """x: [N, C, H, W] float32 (NCHW, matching PyTorch). Returns NCHW output."""
    N, c0, H, W = x.shape
    w1, b1 = params["w1"], params["b1"]
    w2, b2 = params["w2"], params["b2"]
    w3, b3 = params["w3"], params["b3"]
    c1, c2, c_end = int(w1.shape[0]), int(w2.shape[0]), int(w3.shape[0])

    # Static window-start schedules (padding=0).
    h1, w1s = regular_starts(H, 3, 2), regular_starts(W, 3, 2)
    oh1, ow1 = len(h1), len(w1s)
    h2, w2s = alternating_starts(oh1, 3, 2, 3), alternating_starts(ow1, 3, 2, 3)
    oh2, ow2 = len(h2), len(w2s)
    h3, w3s = regular_starts(oh2, 2, 2), regular_starts(ow2, 2, 2)
    oh3, ow3 = len(h3), len(w3s)
    oh1p, oh2p, oh3p = _round_up(oh1, 8), _round_up(oh2, 8), _round_up(oh3, 8)

    # Row-gather selectors and weight-folded column selectors / packed biases.
    sh1 = _row_gather_cat(h1, 3, H)
    sh2 = _row_gather_cat(h2, 3, oh1p)
    sh3 = _row_gather_cat(h3, 2, oh2p)
    swc1 = _col_weight_fold(w1, w1s, W)
    swc2 = _col_weight_fold(w2, w2s, ow1)
    swc3 = _col_weight_fold(w3, w3s, ow2)
    b1p = jnp.repeat(b1, ow1)[None, :]
    b2p = jnp.repeat(b2, ow2)[None, :]
    b3p = jnp.repeat(b3, ow3)[None, :]

    # Lane-pack channels: [N, C, H, W] -> [N, H, C*W].
    xp = jnp.transpose(x, (0, 2, 1, 3)).reshape(N, H, c0 * W)

    b_blk = _pick_batch_block(N)
    grid = (N // b_blk,)

    def const_spec(arr):
        rank = arr.ndim
        return pl.BlockSpec(arr.shape, lambda i, _r=rank: (0,) * _r)

    # Advisory cost estimate, including the gather matmuls.
    def layer_flops(kh, ohp, hin, cin_win, cout_ow):
        return 2 * kh * ohp * hin * cin_win + kh * 2 * ohp * cin_win * cout_ow

    flops = N * (
        layer_flops(3, oh1p, H, c0 * W, c1 * ow1)
        + layer_flops(3, oh2p, oh1p, c1 * ow1, c2 * ow2)
        + layer_flops(2, oh3p, oh2p, c2 * ow2, c_end * ow3)
    )
    bytes_accessed = 4 * int(
        xp.size + N * oh3 * c_end * ow3
        + sh1.size + sh2.size + sh3.size
        + swc1.size + swc2.size + swc3.size
        + b1p.size + b2p.size + b3p.size
    )

    out = pl.pallas_call(
        _fused_terrain_kernel,
        out_shape=jax.ShapeDtypeStruct((N, oh3, c_end * ow3), x.dtype),
        grid_spec=pltpu.PrefetchScalarGridSpec(
            num_scalar_prefetch=0,
            grid=grid,
            in_specs=[
                pl.BlockSpec((b_blk, H, c0 * W), lambda i: (i, 0, 0)),
                const_spec(sh1), const_spec(swc1), const_spec(b1p),
                const_spec(sh2), const_spec(swc2), const_spec(b2p),
                const_spec(sh3), const_spec(swc3), const_spec(b3p),
            ],
            out_specs=pl.BlockSpec((b_blk, oh3, c_end * ow3), lambda i: (i, 0, 0)),
        ),
        compiler_params=pltpu.CompilerParams(
            dimension_semantics=("parallel",),   # batch blocks shard across TCs
        ),
        cost_estimate=pl.CostEstimate(
            flops=int(flops), transcendentals=0, bytes_accessed=bytes_accessed
        ),
    )(xp, sh1, swc1, b1p, sh2, swc2, b2p, sh3, swc3, b3p)

    # Unpack lanes back to NCHW.
    return out.reshape(N, oh3, c_end, ow3).transpose(0, 2, 1, 3)


# ---------------------------------------------------------------------------
# Pure-JAX reference (self-check only)
# ---------------------------------------------------------------------------
def _conv_ref(x, w, b, h_starts, w_starts, kh, kw):
    N, C, H, W = x.shape
    cout = w.shape[0]
    oh, ow = len(h_starts), len(w_starts)
    hs = jnp.asarray(h_starts, jnp.int32)[:, None] + jnp.arange(kh)[None, :]
    ws = jnp.asarray(w_starts, jnp.int32)[:, None] + jnp.arange(kw)[None, :]
    xh = x[:, :, hs, :]              # [N, C, OH, kh, W]
    xw = xh[:, :, :, :, ws]          # [N, C, OH, kh, OW, kw]
    p = jnp.transpose(xw, (0, 2, 4, 1, 3, 5)).reshape(N, oh * ow, C * kh * kw)
    out = jax.lax.dot_general(
        p, w.reshape(cout, -1),
        dimension_numbers=(((2,), (1,)), ((), ())),
        precision=jax.lax.Precision.HIGHEST,
    ) + b
    out = jnp.where(out >= 0, out, LEAKY_SLOPE * out)
    return jnp.transpose(out, (0, 2, 1)).reshape(N, cout, oh, ow)


def terrain_downsample_reference(x, params):
    _, _, H, W = x.shape
    hs, ws = regular_starts(H, 3, 2), regular_starts(W, 3, 2)
    x = _conv_ref(x, params["w1"], params["b1"], hs, ws, 3, 3)
    _, _, H, W = x.shape
    hs, ws = alternating_starts(H, 3, 2, 3), alternating_starts(W, 3, 2, 3)
    x = _conv_ref(x, params["w2"], params["b2"], hs, ws, 3, 3)
    _, _, H, W = x.shape
    hs, ws = regular_starts(H, 2, 2), regular_starts(W, 2, 2)
    x = _conv_ref(x, params["w3"], params["b3"], hs, ws, 2, 2)
    return x


# ---------------------------------------------------------------------------
# Parameters
# ---------------------------------------------------------------------------
def init_conv_params(key, cin, cout, kh, kw):
    kw_key, kb_key = jax.random.split(key)
    fan_in = cin * kh * kw
    bound = 1.0 / (fan_in ** 0.5)
    w = jax.random.uniform(kw_key, (cout, cin, kh, kw), jnp.float32, -bound, bound)
    b = jax.random.uniform(kb_key, (cout,), jnp.float32, -bound, bound)
    return w, b


def init_params(key, c_start, c1, c2, c_end):
    k1, k2, k3 = jax.random.split(key, 3)
    w1, b1 = init_conv_params(k1, c_start, c1, 3, 3)
    w2, b2 = init_conv_params(k2, c1, c2, 3, 3)
    w3, b3 = init_conv_params(k3, c2, c_end, 2, 2)
    return dict(w1=w1, b1=b1, w2=w2, b2=b2, w3=w3, b3=b3)


if __name__ == "__main__":
    key = jax.random.PRNGKey(0)
    k_param, k_x = jax.random.split(key)

    # Small deterministic example: batch=2, c_start=3, spatial 41x41.
    c_start, c1, c2, c_end = 3, 4, 4, 2
    params = init_params(k_param, c_start, c1, c2, c_end)
    x = jax.random.normal(k_x, (2, c_start, 41, 41), jnp.float32)

    out = jax.block_until_ready(terrain_downsample_alternating(x, params))

    # Expected spatial chain: 41 -> 20 (c1) -> 8 (c2, alternating 2/3) -> 4 (c3)
    assert out.shape == (2, c_end, 4, 4), out.shape
    assert bool(jnp.all(jnp.isfinite(out)))

    ref = jax.block_until_ready(terrain_downsample_reference(x, params))
    max_err = float(jnp.max(jnp.abs(out - ref)))
    assert max_err < 2e-3, f"max abs error vs reference: {max_err}"

    print("KERNEL_OK")
</pallas_src>

<mosaic_0001>
module attributes {stable_mosaic.version = 11 : i64} {
  func.func @_fused_terrain_kernel(%arg0: i32, %arg1: memref<2x41x123xf32, #tpu.memory_space<vmem>>, %arg2: memref<72x41xf32, #tpu.memory_space<vmem>>, %arg3: memref<3x123x80xf32, #tpu.memory_space<vmem>>, %arg4: memref<1x80xf32, #tpu.memory_space<vmem>>, %arg5: memref<24x24xf32, #tpu.memory_space<vmem>>, %arg6: memref<3x80x32xf32, #tpu.memory_space<vmem>>, %arg7: memref<1x32xf32, #tpu.memory_space<vmem>>, %arg8: memref<16x8xf32, #tpu.memory_space<vmem>>, %arg9: memref<2x32x8xf32, #tpu.memory_space<vmem>>, %arg10: memref<1x8xf32, #tpu.memory_space<vmem>>, %arg11: memref<2x4x8xf32, #tpu.memory_space<vmem>>) attributes {dimension_semantics = [#tpu.dimension_semantics<parallel>], iteration_bounds = array<i64: 1>, scalar_prefetch = 0 : i64, scratch_operands = 0 : i64, tpu.core_type = #tpu.core_type<tc>, window_params = [{transform_indices = @transform_0, window_bounds = array<i64: 2, 41, 123>}, {pipeline_mode = #tpu.pipeline_mode<synchronous>, transform_indices = @transform_1, window_bounds = array<i64: 72, 41>}, {pipeline_mode = #tpu.pipeline_mode<synchronous>, transform_indices = @transform_2, window_bounds = array<i64: 3, 123, 80>}, {pipeline_mode = #tpu.pipeline_mode<synchronous>, transform_indices = @transform_3, window_bounds = array<i64: 1, 80>}, {pipeline_mode = #tpu.pipeline_mode<synchronous>, transform_indices = @transform_4, window_bounds = array<i64: 24, 24>}, {pipeline_mode = #tpu.pipeline_mode<synchronous>, transform_indices = @transform_5, window_bounds = array<i64: 3, 80, 32>}, {pipeline_mode = #tpu.pipeline_mode<synchronous>, transform_indices = @transform_6, window_bounds = array<i64: 1, 32>}, {pipeline_mode = #tpu.pipeline_mode<synchronous>, transform_indices = @transform_7, window_bounds = array<i64: 16, 8>}, {pipeline_mode = #tpu.pipeline_mode<synchronous>, transform_indices = @transform_8, window_bounds = array<i64: 2, 32, 8>}, {pipeline_mode = #tpu.pipeline_mode<synchronous>, transform_indices = @transform_9, window_bounds = array<i64: 1, 8>}, {transform_indices = @transform_10, window_bounds = array<i64: 2, 4, 8>}]} {
    %c0 = arith.constant 0 : index
    %c0_0 = arith.constant 0 : index
    %c0_1 = arith.constant 0 : index
    %0 = vector.load %arg1[%c0, %c0_0, %c0_1] : memref<2x41x123xf32, #tpu.memory_space<vmem>>, vector<1x41x123xf32>
    %1 = vector.shape_cast %0 : vector<1x41x123xf32> to vector<41x123xf32>
    %c0_2 = arith.constant 0 : index
    %c0_3 = arith.constant 0 : index
    %2 = vector.load %arg2[%c0_2, %c0_3] : memref<72x41xf32, #tpu.memory_space<vmem>>, vector<72x41xf32>
    %cst = arith.constant dense<0.000000e+00> : vector<72x123xf32>
    %3 = tpu.matmul %2, %1, %cst {dimension_numbers = #tpu.dot_dimension_numbers<[1], [0], [0], [1], [0, 0, 1, 1], [], []>} : vector<72x41xf32>, vector<41x123xf32>, vector<72x123xf32> -> vector<72x123xf32>
    %4 = vector.extract_strided_slice %3 {offsets = [0, 0], sizes = [24, 123], strides = [1, 1]} : vector<72x123xf32> to vector<24x123xf32>
    %c0_4 = arith.constant 0 : index
    %c0_5 = arith.constant 0 : index
    %c0_6 = arith.constant 0 : index
    %5 = vector.load %arg3[%c0_4, %c0_5, %c0_6] : memref<3x123x80xf32, #tpu.memory_space<vmem>>, vector<1x123x80xf32>
    %6 = vector.shape_cast %5 : vector<1x123x80xf32> to vector<123x80xf32>
    %cst_7 = arith.constant dense<0.000000e+00> : vector<24x80xf32>
    %7 = tpu.matmul %4, %6, %cst_7 {dimension_numbers = #tpu.dot_dimension_numbers<[1], [0], [0], [1], [0, 0, 1, 1], [], []>} : vector<24x123xf32>, vector<123x80xf32>, vector<24x80xf32> -> vector<24x80xf32>
    %8 = vector.extract_strided_slice %3 {offsets = [24, 0], sizes = [24, 123], strides = [1, 1]} : vector<72x123xf32> to vector<24x123xf32>
    %c1 = arith.constant 1 : index
    %c0_8 = arith.constant 0 : index
    %c0_9 = arith.constant 0 : index
    %9 = vector.load %arg3[%c1, %c0_8, %c0_9] : memref<3x123x80xf32, #tpu.memory_space<vmem>>, vector<1x123x80xf32>
    %10 = vector.shape_cast %9 : vector<1x123x80xf32> to vector<123x80xf32>
    %cst_10 = arith.constant dense<0.000000e+00> : vector<24x80xf32>
    %11 = tpu.matmul %8, %10, %cst_10 {dimension_numbers = #tpu.dot_dimension_numbers<[1], [0], [0], [1], [0, 0, 1, 1], [], []>} : vector<24x123xf32>, vector<123x80xf32>, vector<24x80xf32> -> vector<24x80xf32>
    %12 = arith.addf %7, %11 : vector<24x80xf32>
    %13 = vector.extract_strided_slice %3 {offsets = [48, 0], sizes = [24, 123], strides = [1, 1]} : vector<72x123xf32> to vector<24x123xf32>
    %c2 = arith.constant 2 : index
    %c0_11 = arith.constant 0 : index
    %c0_12 = arith.constant 0 : index
    %14 = vector.load %arg3[%c2, %c0_11, %c0_12] : memref<3x123x80xf32, #tpu.memory_space<vmem>>, vector<1x123x80xf32>
    %15 = vector.shape_cast %14 : vector<1x123x80xf32> to vector<123x80xf32>
    %cst_13 = arith.constant dense<0.000000e+00> : vector<24x80xf32>
    %16 = tpu.matmul %13, %15, %cst_13 {dimension_numbers = #tpu.dot_dimension_numbers<[1], [0], [0], [1], [0, 0, 1, 1], [], []>} : vector<24x123xf32>, vector<123x80xf32>, vector<24x80xf32> -> vector<24x80xf32>
    %17 = arith.addf %12, %16 : vector<24x80xf32>
    %c0_14 = arith.constant 0 : index
    %c0_15 = arith.constant 0 : index
    %18 = vector.load %arg4[%c0_14, %c0_15] : memref<1x80xf32, #tpu.memory_space<vmem>>, vector<1x80xf32>
    %19 = vector.broadcast %18 : vector<1x80xf32> to vector<24x80xf32>
    %20 = arith.addf %17, %19 : vector<24x80xf32>
    %cst_16 = arith.constant 0.000000e+00 : f32
    %21 = vector.broadcast %cst_16 : f32 to vector<24x80xf32>
    %22 = arith.cmpf oge, %20, %21 : vector<24x80xf32>
    %cst_17 = arith.constant 0.00999999977 : f32
    %23 = vector.broadcast %cst_17 : f32 to vector<24x80xf32>
    %24 = arith.mulf %23, %20 : vector<24x80xf32>
    %25 = arith.select %22, %20, %24 : vector<24x80xi1>, vector<24x80xf32>
    %c0_18 = arith.constant 0 : index
    %c0_19 = arith.constant 0 : index
    %26 = vector.load %arg5[%c0_18, %c0_19] : memref<24x24xf32, #tpu.memory_space<vmem>>, vector<24x24xf32>
    %cst_20 = arith.constant dense<0.000000e+00> : vector<24x80xf32>
    %27 = tpu.matmul %26, %25, %cst_20 {dimension_numbers = #tpu.dot_dimension_numbers<[1], [0], [0], [1], [0, 0, 1, 1], [], []>} : vector<24x24xf32>, vector<24x80xf32>, vector<24x80xf32> -> vector<24x80xf32>
    %28 = vector.extract_strided_slice %27 {offsets = [0, 0], sizes = [8, 80], strides = [1, 1]} : vector<24x80xf32> to vector<8x80xf32>
    %c0_21 = arith.constant 0 : index
    %c0_22 = arith.constant 0 : index
    %c0_23 = arith.constant 0 : index
    %29 = vector.load %arg6[%c0_21, %c0_22, %c0_23] : memref<3x80x32xf32, #tpu.memory_space<vmem>>, vector<1x80x32xf32>
    %30 = vector.shape_cast %29 : vector<1x80x32xf32> to vector<80x32xf32>
    %cst_24 = arith.constant dense<0.000000e+00> : vector<8x32xf32>
    %31 = tpu.matmul %28, %30, %cst_24 {dimension_numbers = #tpu.dot_dimension_numbers<[1], [0], [0], [1], [0, 0, 1, 1], [], []>} : vector<8x80xf32>, vector<80x32xf32>, vector<8x32xf32> -> vector<8x32xf32>
    %32 = vector.extract_strided_slice %27 {offsets = [8, 0], sizes = [8, 80], strides = [1, 1]} : vector<24x80xf32> to vector<8x80xf32>
    %c1_25 = arith.constant 1 : index
    %c0_26 = arith.constant 0 : index
    %c0_27 = arith.constant 0 : index
    %33 = vector.load %arg6[%c1_25, %c0_26, %c0_27] : memref<3x80x32xf32, #tpu.memory_space<vmem>>, vector<1x80x32xf32>
    %34 = vector.shape_cast %33 : vector<1x80x32xf32> to vector<80x32xf32>
    %cst_28 = arith.constant dense<0.000000e+00> : vector<8x32xf32>
    %35 = tpu.matmul %32, %34, %cst_28 {dimension_numbers = #tpu.dot_dimension_numbers<[1], [0], [0], [1], [0, 0, 1, 1], [], []>} : vector<8x80xf32>, vector<80x32xf32>, vector<8x32xf32> -> vector<8x32xf32>
    %36 = arith.addf %31, %35 : vector<8x32xf32>
    %37 = vector.extract_strided_slice %27 {offsets = [16, 0], sizes = [8, 80], strides = [1, 1]} : vector<24x80xf32> to vector<8x80xf32>
    %c2_29 = arith.constant 2 : index
    %c0_30 = arith.constant 0 : index
    %c0_31 = arith.constant 0 : index
    %38 = vector.load %arg6[%c2_29, %c0_30, %c0_31] : memref<3x80x32xf32, #tpu.memory_space<vmem>>, vector<1x80x32xf32>
    %39 = vector.shape_cast %38 : vector<1x80x32xf32> to vector<80x32xf32>
    %cst_32 = arith.constant dense<0.000000e+00> : vector<8x32xf32>
    %40 = tpu.matmul %37, %39, %cst_32 {dimension_numbers = #tpu.dot_dimension_numbers<[1], [0], [0], [1], [0, 0, 1, 1], [], []>} : vector<8x80xf32>, vector<80x32xf32>, vector<8x32xf32> -> vector<8x32xf32>
    %41 = arith.addf %36, %40 : vector<8x32xf32>
    %c0_33 = arith.constant 0 : index
    %c0_34 = arith.constant 0 : index
    %42 = vector.load %arg7[%c0_33, %c0_34] : memref<1x32xf32, #tpu.memory_space<vmem>>, vector<1x32xf32>
    %43 = vector.broadcast %42 : vector<1x32xf32> to vector<8x32xf32>
    %44 = arith.addf %41, %43 : vector<8x32xf32>
    %cst_35 = arith.constant 0.000000e+00 : f32
    %45 = vector.broadcast %cst_35 : f32 to vector<8x32xf32>
    %46 = arith.cmpf oge, %44, %45 : vector<8x32xf32>
    %cst_36 = arith.constant 0.00999999977 : f32
    %47 = vector.broadcast %cst_36 : f32 to vector<8x32xf32>
    %48 = arith.mulf %47, %44 : vector<8x32xf32>
    %49 = arith.select %46, %44, %48 : vector<8x32xi1>, vector<8x32xf32>
    %c0_37 = arith.constant 0 : index
    %c0_38 = arith.constant 0 : index
    %50 = vector.load %arg8[%c0_37, %c0_38] : memref<16x8xf32, #tpu.memory_space<vmem>>, vector<16x8xf32>
    %cst_39 = arith.constant dense<0.000000e+00> : vector<16x32xf32>
    %51 = tpu.matmul %50, %49, %cst_39 {dimension_numbers = #tpu.dot_dimension_numbers<[1], [0], [0], [1], [0, 0, 1, 1], [], []>} : vector<16x8xf32>, vector<8x32xf32>, vector<16x32xf32> -> vector<16x32xf32>
    %52 = vector.extract_strided_slice %51 {offsets = [0, 0], sizes = [8, 32], strides = [1, 1]} : vector<16x32xf32> to vector<8x32xf32>
    %c0_40 = arith.constant 0 : index
    %c0_41 = arith.constant 0 : index
    %c0_42 = arith.constant 0 : index
    %53 = vector.load %arg9[%c0_40, %c0_41, %c0_42] : memref<2x32x8xf32, #tpu.memory_space<vmem>>, vector<1x32x8xf32>
    %54 = vector.shape_cast %53 : vector<1x32x8xf32> to vector<32x8xf32>
    %cst_43 = arith.constant dense<0.000000e+00> : vector<8x8xf32>
    %55 = tpu.matmul %52, %54, %cst_43 {dimension_numbers = #tpu.dot_dimension_numbers<[1], [0], [0], [1], [0, 0, 1, 1], [], []>} : vector<8x32xf32>, vector<32x8xf32>, vector<8x8xf32> -> vector<8x8xf32>
    %56 = vector.extract_strided_slice %51 {offsets = [8, 0], sizes = [8, 32], strides = [1, 1]} : vector<16x32xf32> to vector<8x32xf32>
    %c1_44 = arith.constant 1 : index
    %c0_45 = arith.constant 0 : index
    %c0_46 = arith.constant 0 : index
    %57 = vector.load %arg9[%c1_44, %c0_45, %c0_46] : memref<2x32x8xf32, #tpu.memory_space<vmem>>, vector<1x32x8xf32>
    %58 = vector.shape_cast %57 : vector<1x32x8xf32> to vector<32x8xf32>
    %cst_47 = arith.constant dense<0.000000e+00> : vector<8x8xf32>
    %59 = tpu.matmul %56, %58, %cst_47 {dimension_numbers = #tpu.dot_dimension_numbers<[1], [0], [0], [1], [0, 0, 1, 1], [], []>} : vector<8x32xf32>, vector<32x8xf32>, vector<8x8xf32> -> vector<8x8xf32>
    %60 = arith.addf %55, %59 : vector<8x8xf32>
    %c0_48 = arith.constant 0 : index
    %c0_49 = arith.constant 0 : index
    %61 = vector.load %arg10[%c0_48, %c0_49] : memref<1x8xf32, #tpu.memory_space<vmem>>, vector<1x8xf32>
    %62 = vector.broadcast %61 : vector<1x8xf32> to vector<8x8xf32>
    %63 = arith.addf %60, %62 : vector<8x8xf32>
    %cst_50 = arith.constant 0.000000e+00 : f32
    %64 = vector.broadcast %cst_50 : f32 to vector<8x8xf32>
    %65 = arith.cmpf oge, %63, %64 : vector<8x8xf32>
    %cst_51 = arith.constant 0.00999999977 : f32
    %66 = vector.broadcast %cst_51 : f32 to vector<8x8xf32>
    %67 = arith.mulf %66, %63 : vector<8x8xf32>
    %68 = arith.select %65, %63, %67 : vector<8x8xi1>, vector<8x8xf32>
    %69 = vector.extract_strided_slice %68 {offsets = [0, 0], sizes = [4, 8], strides = [1, 1]} : vector<8x8xf32> to vector<4x8xf32>
    %c0_52 = arith.constant 0 : index
    %c0_53 = arith.constant 0 : index
    %c0_54 = arith.constant 0 : index
    %70 = vector.load %arg11[%c0_52, %c0_53, %c0_54] : memref<2x4x8xf32, #tpu.memory_space<vmem>>, vector<1x4x8xf32>
    %71 = vector.shape_cast %70 : vector<1x4x8xf32> to vector<4x8xf32>
    %72 = vector.shape_cast %69 : vector<4x8xf32> to vector<1x4x8xf32>
    tpu.vector_store %arg11[%c0_52, %c0_53, %c0_54], %72 {strides = array<i32>} : memref<2x4x8xf32, #tpu.memory_space<vmem>>, vector<1x4x8xf32>,
    %c1_55 = arith.constant 1 : index
    %c0_56 = arith.constant 0 : index
    %c0_57 = arith.constant 0 : index
    %73 = vector.load %arg1[%c1_55, %c0_56, %c0_57] : memref<2x41x123xf32, #tpu.memory_space<vmem>>, vector<1x41x123xf32>
    %74 = vector.shape_cast %73 : vector<1x41x123xf32> to vector<41x123xf32>
    %c0_58 = arith.constant 0 : index
    %c0_59 = arith.constant 0 : index
    %75 = vector.load %arg2[%c0_58, %c0_59] : memref<72x41xf32, #tpu.memory_space<vmem>>, vector<72x41xf32>
    %cst_60 = arith.constant dense<0.000000e+00> : vector<72x123xf32>
    %76 = tpu.matmul %75, %74, %cst_60 {dimension_numbers = #tpu.dot_dimension_numbers<[1], [0], [0], [1], [0, 0, 1, 1], [], []>} : vector<72x41xf32>, vector<41x123xf32>, vector<72x123xf32> -> vector<72x123xf32>
    %77 = vector.extract_strided_slice %76 {offsets = [0, 0], sizes = [24, 123], strides = [1, 1]} : vector<72x123xf32> to vector<24x123xf32>
    %c0_61 = arith.constant 0 : index
    %c0_62 = arith.constant 0 : index
    %c0_63 = arith.constant 0 : index
    %78 = vector.load %arg3[%c0_61, %c0_62, %c0_63] : memref<3x123x80xf32, #tpu.memory_space<vmem>>, vector<1x123x80xf32>
    %79 = vector.shape_cast %78 : vector<1x123x80xf32> to vector<123x80xf32>
    %cst_64 = arith.constant dense<0.000000e+00> : vector<24x80xf32>
    %80 = tpu.matmul %77, %79, %cst_64 {dimension_numbers = #tpu.dot_dimension_numbers<[1], [0], [0], [1], [0, 0, 1, 1], [], []>} : vector<24x123xf32>, vector<123x80xf32>, vector<24x80xf32> -> vector<24x80xf32>
    %81 = vector.extract_strided_slice %76 {offsets = [24, 0], sizes = [24, 123], strides = [1, 1]} : vector<72x123xf32> to vector<24x123xf32>
    %c1_65 = arith.constant 1 : index
    %c0_66 = arith.constant 0 : index
    %c0_67 = arith.constant 0 : index
    %82 = vector.load %arg3[%c1_65, %c0_66, %c0_67] : memref<3x123x80xf32, #tpu.memory_space<vmem>>, vector<1x123x80xf32>
    %83 = vector.shape_cast %82 : vector<1x123x80xf32> to vector<123x80xf32>
    %cst_68 = arith.constant dense<0.000000e+00> : vector<24x80xf32>
    %84 = tpu.matmul %81, %83, %cst_68 {dimension_numbers = #tpu.dot_dimension_numbers<[1], [0], [0], [1], [0, 0, 1, 1], [], []>} : vector<24x123xf32>, vector<123x80xf32>, vector<24x80xf32> -> vector<24x80xf32>
    %85 = arith.addf %80, %84 : vector<24x80xf32>
    %86 = vector.extract_strided_slice %76 {offsets = [48, 0], sizes = [24, 123], strides = [1, 1]} : vector<72x123xf32> to vector<24x123xf32>
    %c2_69 = arith.constant 2 : index
    %c0_70 = arith.constant 0 : index
    %c0_71 = arith.constant 0 : index
    %87 = vector.load %arg3[%c2_69, %c0_70, %c0_71] : memref<3x123x80xf32, #tpu.memory_space<vmem>>, vector<1x123x80xf32>
    %88 = vector.shape_cast %87 : vector<1x123x80xf32> to vector<123x80xf32>
    %cst_72 = arith.constant dense<0.000000e+00> : vector<24x80xf32>
    %89 = tpu.matmul %86, %88, %cst_72 {dimension_numbers = #tpu.dot_dimension_numbers<[1], [0], [0], [1], [0, 0, 1, 1], [], []>} : vector<24x123xf32>, vector<123x80xf32>, vector<24x80xf32> -> vector<24x80xf32>
    %90 = arith.addf %85, %89 : vector<24x80xf32>
    %c0_73 = arith.constant 0 : index
    %c0_74 = arith.constant 0 : index
    %91 = vector.load %arg4[%c0_73, %c0_74] : memref<1x80xf32, #tpu.memory_space<vmem>>, vector<1x80xf32>
    %92 = vector.broadcast %91 : vector<1x80xf32> to vector<24x80xf32>
    %93 = arith.addf %90, %92 : vector<24x80xf32>
    %cst_75 = arith.constant 0.000000e+00 : f32
    %94 = vector.broadcast %cst_75 : f32 to vector<24x80xf32>
    %95 = arith.cmpf oge, %93, %94 : vector<24x80xf32>
    %cst_76 = arith.constant 0.00999999977 : f32
    %96 = vector.broadcast %cst_76 : f32 to vector<24x80xf32>
    %97 = arith.mulf %96, %93 : vector<24x80xf32>
    %98 = arith.select %95, %93, %97 : vector<24x80xi1>, vector<24x80xf32>
    %c0_77 = arith.constant 0 : index
    %c0_78 = arith.constant 0 : index
    %99 = vector.load %arg5[%c0_77, %c0_78] : memref<24x24xf32, #tpu.memory_space<vmem>>, vector<24x24xf32>
    %cst_79 = arith.constant dense<0.000000e+00> : vector<24x80xf32>
    %100 = tpu.matmul %99, %98, %cst_79 {dimension_numbers = #tpu.dot_dimension_numbers<[1], [0], [0], [1], [0, 0, 1, 1], [], []>} : vector<24x24xf32>, vector<24x80xf32>, vector<24x80xf32> -> vector<24x80xf32>
    %101 = vector.extract_strided_slice %100 {offsets = [0, 0], sizes = [8, 80], strides = [1, 1]} : vector<24x80xf32> to vector<8x80xf32>
    %c0_80 = arith.constant 0 : index
    %c0_81 = arith.constant 0 : index
    %c0_82 = arith.constant 0 : index
    %102 = vector.load %arg6[%c0_80, %c0_81, %c0_82] : memref<3x80x32xf32, #tpu.memory_space<vmem>>, vector<1x80x32xf32>
    %103 = vector.shape_cast %102 : vector<1x80x32xf32> to vector<80x32xf32>
    %cst_83 = arith.constant dense<0.000000e+00> : vector<8x32xf32>
    %104 = tpu.matmul %101, %103, %cst_83 {dimension_numbers = #tpu.dot_dimension_numbers<[1], [0], [0], [1], [0, 0, 1, 1], [], []>} : vector<8x80xf32>, vector<80x32xf32>, vector<8x32xf32> -> vector<8x32xf32>
    %105 = vector.extract_strided_slice %100 {offsets = [8, 0], sizes = [8, 80], strides = [1, 1]} : vector<24x80xf32> to vector<8x80xf32>
    %c1_84 = arith.constant 1 : index
    %c0_85 = arith.constant 0 : index
    %c0_86 = arith.constant 0 : index
    %106 = vector.load %arg6[%c1_84, %c0_85, %c0_86] : memref<3x80x32xf32, #tpu.memory_space<vmem>>, vector<1x80x32xf32>
    %107 = vector.shape_cast %106 : vector<1x80x32xf32> to vector<80x32xf32>
    %cst_87 = arith.constant dense<0.000000e+00> : vector<8x32xf32>
    %108 = tpu.matmul %105, %107, %cst_87 {dimension_numbers = #tpu.dot_dimension_numbers<[1], [0], [0], [1], [0, 0, 1, 1], [], []>} : vector<8x80xf32>, vector<80x32xf32>, vector<8x32xf32> -> vector<8x32xf32>
    %109 = arith.addf %104, %108 : vector<8x32xf32>
    %110 = vector.extract_strided_slice %100 {offsets = [16, 0], sizes = [8, 80], strides = [1, 1]} : vector<24x80xf32> to vector<8x80xf32>
    %c2_88 = arith.constant 2 : index
    %c0_89 = arith.constant 0 : index
    %c0_90 = arith.constant 0 : index
    %111 = vector.load %arg6[%c2_88, %c0_89, %c0_90] : memref<3x80x32xf32, #tpu.memory_space<vmem>>, vector<1x80x32xf32>
    %112 = vector.shape_cast %111 : vector<1x80x32xf32> to vector<80x32xf32>
    %cst_91 = arith.constant dense<0.000000e+00> : vector<8x32xf32>
    %113 = tpu.matmul %110, %112, %cst_91 {dimension_numbers = #tpu.dot_dimension_numbers<[1], [0], [0], [1], [0, 0, 1, 1], [], []>} : vector<8x80xf32>, vector<80x32xf32>, vector<8x32xf32> -> vector<8x32xf32>
    %114 = arith.addf %109, %113 : vector<8x32xf32>
    %c0_92 = arith.constant 0 : index
    %c0_93 = arith.constant 0 : index
    %115 = vector.load %arg7[%c0_92, %c0_93] : memref<1x32xf32, #tpu.memory_space<vmem>>, vector<1x32xf32>
    %116 = vector.broadcast %115 : vector<1x32xf32> to vector<8x32xf32>
    %117 = arith.addf %114, %116 : vector<8x32xf32>
    %cst_94 = arith.constant 0.000000e+00 : f32
    %118 = vector.broadcast %cst_94 : f32 to vector<8x32xf32>
    %119 = arith.cmpf oge, %117, %118 : vector<8x32xf32>
    %cst_95 = arith.constant 0.00999999977 : f32
    %120 = vector.broadcast %cst_95 : f32 to vector<8x32xf32>
    %121 = arith.mulf %120, %117 : vector<8x32xf32>
    %122 = arith.select %119, %117, %121 : vector<8x32xi1>, vector<8x32xf32>
    %c0_96 = arith.constant 0 : index
    %c0_97 = arith.constant 0 : index
    %123 = vector.load %arg8[%c0_96, %c0_97] : memref<16x8xf32, #tpu.memory_space<vmem>>, vector<16x8xf32>
    %cst_98 = arith.constant dense<0.000000e+00> : vector<16x32xf32>
    %124 = tpu.matmul %123, %122, %cst_98 {dimension_numbers = #tpu.dot_dimension_numbers<[1], [0], [0], [1], [0, 0, 1, 1], [], []>} : vector<16x8xf32>, vector<8x32xf32>, vector<16x32xf32> -> vector<16x32xf32>
    %125 = vector.extract_strided_slice %124 {offsets = [0, 0], sizes = [8, 32], strides = [1, 1]} : vector<16x32xf32> to vector<8x32xf32>
    %c0_99 = arith.constant 0 : index
    %c0_100 = arith.constant 0 : index
    %c0_101 = arith.constant 0 : index
    %126 = vector.load %arg9[%c0_99, %c0_100, %c0_101] : memref<2x32x8xf32, #tpu.memory_space<vmem>>, vector<1x32x8xf32>
    %127 = vector.shape_cast %126 : vector<1x32x8xf32> to vector<32x8xf32>
    %cst_102 = arith.constant dense<0.000000e+00> : vector<8x8xf32>
    %128 = tpu.matmul %125, %127, %cst_102 {dimension_numbers = #tpu.dot_dimension_numbers<[1], [0], [0], [1], [0, 0, 1, 1], [], []>} : vector<8x32xf32>, vector<32x8xf32>, vector<8x8xf32> -> vector<8x8xf32>
    %129 = vector.extract_strided_slice %124 {offsets = [8, 0], sizes = [8, 32], strides = [1, 1]} : vector<16x32xf32> to vector<8x32xf32>
    %c1_103 = arith.constant 1 : index
    %c0_104 = arith.constant 0 : index
    %c0_105 = arith.constant 0 : index
    %130 = vector.load %arg9[%c1_103, %c0_104, %c0_105] : memref<2x32x8xf32, #tpu.memory_space<vmem>>, vector<1x32x8xf32>
    %131 = vector.shape_cast %130 : vector<1x32x8xf32> to vector<32x8xf32>
    %cst_106 = arith.constant dense<0.000000e+00> : vector<8x8xf32>
    %132 = tpu.matmul %129, %131, %cst_106 {dimension_numbers = #tpu.dot_dimension_numbers<[1], [0], [0], [1], [0, 0, 1, 1], [], []>} : vector<8x32xf32>, vector<32x8xf32>, vector<8x8xf32> -> vector<8x8xf32>
    %133 = arith.addf %128, %132 : vector<8x8xf32>
    %c0_107 = arith.constant 0 : index
    %c0_108 = arith.constant 0 : index
    %134 = vector.load %arg10[%c0_107, %c0_108] : memref<1x8xf32, #tpu.memory_space<vmem>>, vector<1x8xf32>
    %135 = vector.broadcast %134 : vector<1x8xf32> to vector<8x8xf32>
    %136 = arith.addf %133, %135 : vector<8x8xf32>
    %cst_109 = arith.constant 0.000000e+00 : f32
    %137 = vector.broadcast %cst_109 : f32 to vector<8x8xf32>
    %138 = arith.cmpf oge, %136, %137 : vector<8x8xf32>
    %cst_110 = arith.constant 0.00999999977 : f32
    %139 = vector.broadcast %cst_110 : f32 to vector<8x8xf32>
    %140 = arith.mulf %139, %136 : vector<8x8xf32>
    %141 = arith.select %138, %136, %140 : vector<8x8xi1>, vector<8x8xf32>
    %142 = vector.extract_strided_slice %141 {offsets = [0, 0], sizes = [4, 8], strides = [1, 1]} : vector<8x8xf32> to vector<4x8xf32>
    %c1_111 = arith.constant 1 : index
    %c0_112 = arith.constant 0 : index
    %c0_113 = arith.constant 0 : index
    %143 = vector.load %arg11[%c1_111, %c0_112, %c0_113] : memref<2x4x8xf32, #tpu.memory_space<vmem>>, vector<1x4x8xf32>
    %144 = vector.shape_cast %143 : vector<1x4x8xf32> to vector<4x8xf32>
    %145 = vector.shape_cast %142 : vector<4x8xf32> to vector<1x4x8xf32>
    tpu.vector_store %arg11[%c1_111, %c0_112, %c0_113], %145 {strides = array<i32>} : memref<2x4x8xf32, #tpu.memory_space<vmem>>, vector<1x4x8xf32>,
    return
  }
  func.func @transform_0(%arg0: i32) -> (i32, i32, i32) {
    %c0_i32 = arith.constant 0 : i32
    %c0_i32_0 = arith.constant 0 : i32
    %c0_i32_1 = arith.constant 0 : i32
    return %arg0, %c0_i32, %c0_i32_0 : i32, i32, i32
  }
  func.func @transform_1(%arg0: i32) -> (i32, i32) {
    %c0_i32 = arith.constant 0 : i32
    %c0_i32_0 = arith.constant 0 : i32
    %c0_i32_1 = arith.constant 0 : i32
    return %c0_i32, %c0_i32_0 : i32, i32
  }
  func.func @transform_2(%arg0: i32) -> (i32, i32, i32) {
    %c0_i32 = arith.constant 0 : i32
    %c0_i32_0 = arith.constant 0 : i32
    %c0_i32_1 = arith.constant 0 : i32
    %c0_i32_2 = arith.constant 0 : i32
    return %c0_i32, %c0_i32_0, %c0_i32_1 : i32, i32, i32
  }
  func.func @transform_3(%arg0: i32) -> (i32, i32) {
    %c0_i32 = arith.constant 0 : i32
    %c0_i32_0 = arith.constant 0 : i32
    %c0_i32_1 = arith.constant 0 : i32
    return %c0_i32, %c0_i32_0 : i32, i32
  }
  func.func @transform_4(%arg0: i32) -> (i32, i32) {
    %c0_i32 = arith.constant 0 : i32
    %c0_i32_0 = arith.constant 0 : i32
    %c0_i32_1 = arith.constant 0 : i32
    return %c0_i32, %c0_i32_0 : i32, i32
  }
  func.func @transform_5(%arg0: i32) -> (i32, i32, i32) {
    %c0_i32 = arith.constant 0 : i32
    %c0_i32_0 = arith.constant 0 : i32
    %c0_i32_1 = arith.constant 0 : i32
    %c0_i32_2 = arith.constant 0 : i32
    return %c0_i32, %c0_i32_0, %c0_i32_1 : i32, i32, i32
  }
  func.func @transform_6(%arg0: i32) -> (i32, i32) {
    %c0_i32 = arith.constant 0 : i32
    %c0_i32_0 = arith.constant 0 : i32
    %c0_i32_1 = arith.constant 0 : i32
    return %c0_i32, %c0_i32_0 : i32, i32
  }
  func.func @transform_7(%arg0: i32) -> (i32, i32) {
    %c0_i32 = arith.constant 0 : i32
    %c0_i32_0 = arith.constant 0 : i32
    %c0_i32_1 = arith.constant 0 : i32
    return %c0_i32, %c0_i32_0 : i32, i32
  }
  func.func @transform_8(%arg0: i32) -> (i32, i32, i32) {
    %c0_i32 = arith.constant 0 : i32
    %c0_i32_0 = arith.constant 0 : i32
    %c0_i32_1 = arith.constant 0 : i32
    %c0_i32_2 = arith.constant 0 : i32
    return %c0_i32, %c0_i32_0, %c0_i32_1 : i32, i32, i32
  }
  func.func @transform_9(%arg0: i32) -> (i32, i32) {
    %c0_i32 = arith.constant 0 : i32
    %c0_i32_0 = arith.constant 0 : i32
    %c0_i32_1 = arith.constant 0 : i32
    return %c0_i32, %c0_i32_0 : i32, i32
  }
  func.func @transform_10(%arg0: i32) -> (i32, i32, i32) {
    %c0_i32 = arith.constant 0 : i32
    %c0_i32_0 = arith.constant 0 : i32
    %c0_i32_1 = arith.constant 0 : i32
    return %arg0, %c0_i32, %c0_i32_0 : i32, i32, i32
  }
}

</mosaic_0001>

<llo_original>
// kernel: tpu_custom_call.1
$region0: #{tpu_custom_call.1}
  #allocation0 [shape = 'u32[]', space=smem, size = 0x4, offset = 0x4, fixed_abs, tag = 'smem constant byte address 0x4 - core index']
  #allocation1 [shape = 'u32[144,128]{1,0:T(1,128)}', space=vmem, size = 0x12000, scoped, tag = 'internal scratch']
  %s0 = inlined_call_operand.vmem [shape: f32[2,41,123], index: 0, kind: input, shape index: {}]
  %s1 = inlined_call_operand.vmem [shape: f32[72,41], index: 1, kind: input, shape index: {}]
  %s2 = inlined_call_operand.vmem [shape: f32[3,123,80], index: 2, kind: input, shape index: {}]
  %s3 = inlined_call_operand.vmem [shape: f32[1,80], index: 3, kind: input, shape index: {}]
  %s4 = inlined_call_operand.vmem [shape: f32[24,24], index: 4, kind: input, shape index: {}]
  %s5 = inlined_call_operand.vmem [shape: f32[3,80,32], index: 5, kind: input, shape index: {}]
  %s6 = inlined_call_operand.vmem [shape: f32[1,32], index: 6, kind: input, shape index: {}]
  %s7 = inlined_call_operand.vmem [shape: f32[16,8], index: 7, kind: input, shape index: {}]
  %s8 = inlined_call_operand.vmem [shape: f32[2,32,8], index: 8, kind: input, shape index: {}]
  %s9 = inlined_call_operand.vmem [shape: f32[1,8], index: 9, kind: input, shape index: {}]
  %s10 = inlined_call_operand.hbm [shape: f32[2,4,8], index: 10, kind: output, shape index: {}]
  %s11 = sld [smem:[#allocation0]]
  $region50: #{tpu_custom_call.1} parent=0
    _
  %s13 = ssub.s32 1, %s11
  %s14 = scalar_select 0, %s13, %s11
  $region1: #{tpu_custom_call.1} parent=0
    #allocation2 [shape = 'u8[4096]{0}', space=vmem, size = 0x1000, scoped, tag = 'output window, operand 0, single buffered']
    #allocation3 [shape = 's32[1]{0}', space=sflag, size = 0x4, scoped, tag = 'scoped memory for tpu_custom_call.1']
    %15 = vsyncpa [#allocation3], 0
    // Predicated region
    $region2: #{tpu_custom_call.1} parent=1 // pred_check
      _
    $region3: #{tpu_custom_call.1} parent=1 // pred_check_branch
      %17 = sbr.rel (0) target = $region5
    $region4: #{tpu_custom_call.1} parent=1 // pred_region
      _
    $region5: #{tpu_custom_call.1} parent=1 // pred_fallthru
      _
    // Predicated region
    $region6: #{tpu_custom_call.1} parent=1 // pred_check
      _
    $region7: #{tpu_custom_call.1} parent=1 // pred_check_branch
      %19 = sbr.rel (0) target = $region9
    $region8: #{tpu_custom_call.1} parent=1 // pred_region
      _
    $region9: #{tpu_custom_call.1} parent=1 // pred_fallthru
      _
    // Predicated region
    $region10: #{tpu_custom_call.1} parent=1 // pred_check
      _
    $region11: #{tpu_custom_call.1} parent=1 // pred_check_branch
      %21 = sbr.rel (0) target = $region13
    $region12: #{tpu_custom_call.1} parent=1 // pred_region
      _
    $region13: #{tpu_custom_call.1} parent=1 // pred_fallthru
      _
    // Predicated region
    $region14: #{tpu_custom_call.1} parent=1 // pred_check
      _
    $region15: #{tpu_custom_call.1} parent=1 // pred_check_branch
      %23 = sbr.rel (0) target = $region17
    $region16: #{tpu_custom_call.1} parent=1 // pred_region
      _
    $region17: #{tpu_custom_call.1} parent=1 // pred_fallthru
      _
    // Predicated region
    $region18: #{tpu_custom_call.1} parent=1 // pred_check
      _
    $region19: #{tpu_custom_call.1} parent=1 // pred_check_branch
      %25 = sbr.rel (0) target = $region21
    $region20: #{tpu_custom_call.1} parent=1 // pred_region
      _
    $region21: #{tpu_custom_call.1} parent=1 // pred_fallthru
      _
    // Predicated region
    $region22: #{tpu_custom_call.1} parent=1 // pred_check
      _
    $region23: #{tpu_custom_call.1} parent=1 // pred_check_branch
      %27 = sbr.rel (0) target = $region25
    $region24: #{tpu_custom_call.1} parent=1 // pred_region
      _
    $region25: #{tpu_custom_call.1} parent=1 // pred_fallthru
      _
    // Predicated region
    $region26: #{tpu_custom_call.1} parent=1 // pred_check
      _
    $region27: #{tpu_custom_call.1} parent=1 // pred_check_branch
      %29 = sbr.rel (0) target = $region29
    $region28: #{tpu_custom_call.1} parent=1 // pred_region
      _
    $region29: #{tpu_custom_call.1} parent=1 // pred_fallthru
      _
    // Predicated region
    $region30: #{tpu_custom_call.1} parent=1 // pred_check
      _
    $region31: #{tpu_custom_call.1} parent=1 // pred_check_branch
      %31 = sbr.rel (0) target = $region33
    $region32: #{tpu_custom_call.1} parent=1 // pred_region
      _
    $region33: #{tpu_custom_call.1} parent=1 // pred_fallthru
      _
    // Predicated region
    $region34: #{tpu_custom_call.1} parent=1 // pred_check
      _
    $region35: #{tpu_custom_call.1} parent=1 // pred_check_branch
      %33 = sbr.rel (0) target = $region37
    $region36: #{tpu_custom_call.1} parent=1 // pred_region
      _
    $region37: #{tpu_custom_call.1} parent=1 // pred_fallthru
      _
    // Predicated region
    $region38: #{tpu_custom_call.1} parent=1 // pred_check
      _
    $region39: #{tpu_custom_call.1} parent=1 // pred_check_branch
      %35 = sbr.rel (0) target = $region41
    $region40: #{tpu_custom_call.1} parent=1 // pred_region
      _
    $region41: #{tpu_custom_call.1} parent=1 // pred_fallthru
      _
    %v36 = vld [vmem:[%s0] sm:$0xff]
    %v37 = vld [vmem:[%s0 + $0x8] sm:$0xff]
    %v38 = vld [vmem:[%s0 + $0x10] sm:$0xff]
    %v39 = vld [vmem:[%s0 + $0x18] sm:$0xff]
    %v40 = vld [vmem:[%s0 + $0x20] sm:$0xff]
    %v41 = vld [vmem:[%s0 + $0x28] sm:$0x1]
    %v42 = vld [vmem:[%s1] sm:$0xff]
    %v43 = vld [vmem:[%s1 + $0x8] sm:$0xff]
    %v44 = vld [vmem:[%s1 + $0x10] sm:$0xff]
    %v45 = vld [vmem:[%s1 + $0x18] sm:$0xff]
    %v46 = vld [vmem:[%s1 + $0x20] sm:$0xff]
    %v47 = vld [vmem:[%s1 + $0x28] sm:$0xff]
    %v48 = vld [vmem:[%s1 + $0x30] sm:$0xff]
    %v49 = vld [vmem:[%s1 + $0x38] sm:$0xff]
    %v50 = vld [vmem:[%s1 + $0x40] sm:$0xff]
    %vm51 = vcmask 334848
    %v53 = vsel %vm51, %v42, 0
    %v56 = vsel %vm51, %v43, 0
    %v59 = vsel %vm51, %v44, 0
    %v62 = vsel %vm51, %v45, 0
    %v65 = vsel %vm51, %v46, 0
    %v68 = vsel %vm51, %v47, 0
    %v71 = vsel %vm51, %v48, 0
    %v74 = vsel %vm51, %v49, 0
    %v77 = vsel %vm51, %v50, 0
    %vm79 = vcmask 1040384
    %v81 = vsel %vm79, %v41, 0
    %83 = vmatprep.subr.mxu0 0.0
    %84 = vmatpush1.msra.mxu0 %v36
    %85 = vmatprep.subr.mxu0 0.0
    %86 = vmatpush1.msra.mxu0 %v37
    %87 = vmatprep.subr.mxu0 0.0
    %88 = vmatpush1.msra.mxu0 %v38
    %89 = vmatprep.subr.mxu0 0.0
    %90 = vmatpush1.msra.mxu0 %v39
    %91 = vmatprep.subr.mxu0 0.0
    %92 = vmatpush1.msra.mxu0 %v40
    %93 = vmatprep.subr.mxu0 0.0
    %94 = vmatpush1.msra.mxu0 %v81
    %95 = vmatprep.subr.mxu0 0.0
    %96 = vmatpush1.msra.mxu0 0.0
    %97 = vmatprep.subr.mxu0 0.0
    %98 = vmatpush1.msra.mxu0 0.0
    %99 = vmatprep.subr.mxu0 0.0
    %100 = vmatpush1.msra.mxu0 0.0
    %101 = vmatprep.subr.mxu0 0.0
    %102 = vmatpush1.msra.mxu0 0.0
    %103 = vmatprep.subr.mxu0 0.0
    %104 = vmatpush1.msra.mxu0 0.0
    %105 = vmatprep.subr.mxu0 0.0
    %106 = vmatpush1.msra.mxu0 0.0
    %107 = vmatprep.subr.mxu0 0.0
    %108 = vmatpush1.msra.mxu0 0.0
    %109 = vmatprep.subr.mxu0 0.0
    %110 = vmatpush1.msra.mxu0 0.0
    %111 = vmatprep.subr.mxu0 0.0
    %112 = vmatpush1.msra.mxu0 0.0
    %113 = vmatprep.subr.mxu0 0.0
    %114 = vmatpush1.msra.mxu0 0.0
    %115 = vmatprep.subr.mxu0 0.0
    %116 = vmatpush1.msra.mxu0 0.0
    %117 = vmatprep.subr.mxu0 0.0
    %118 = vmatpush1.msra.mxu0 0.0
    %119 = vmatprep.subr.mxu0 0.0
    %120 = vmatpush1.msra.mxu0 0.0
    %121 = vmatprep.subr.mxu0 0.0
    %122 = vmatpush1.msra.mxu0 0.0
    %123 = vmatprep.subr.mxu0 0.0
    %124 = vmatpush1.msra.mxu0 0.0
    %125 = vmatprep.subr.mxu0 0.0
    %126 = vmatpush1.msra.mxu0 0.0
    %127 = vmatprep.subr.mxu0 0.0
    %128 = vmatpush1.msra.mxu0 0.0
    %129 = vmatprep.subr.mxu0 0.0
    %130 = vmatpush1.msra.mxu0 0.0
    %131 = vmatprep.subr.mxu0 0.0
    %132 = vmatpush1.msra.mxu0 0.0
    %133 = vmatprep.subr.mxu0 0.0
    %134 = vmatpush1.msra.mxu0 0.0
    %135 = vmatprep.subr.mxu0 0.0
    %136 = vmatpush1.msra.mxu0 0.0
    %137 = vmatprep.subr.mxu0 0.0
    %138 = vmatpush1.msra.mxu0 0.0
    %139 = vmatprep.subr.mxu0 0.0
    %140 = vmatpush1.msra.mxu0 0.0
    %141 = vmatprep.subr.mxu0 0.0
    %142 = vmatpush1.msra.mxu0 0.0
    %143 = vmatprep.subr.mxu0 0.0
    %144 = vmatpush1.msra.mxu0 0.0
    %145 = vmatprep.subr.mxu0 0.0
    %146 = vmatpush1.msra.mxu0 0.0
    %147 = vmatprep.mubr.f32.mxu0 0.0
    %148 = vmatmul.mubr.f32.gmra.mrb[0].mxu0 %v53
    %v149 = vpop.f32.mrb[0].mxu0
    %v150 = vadd.f32 0.0, %v149
    %v151 = vpop.f32.mrb[0].mxu0
    %152 = vmatprep.mubr.f32.mxu0 0.0
    %153 = vmatmul.mubr.f32.gmra.mrb[0].mxu0 %v56
    %v154 = vpop.f32.mrb[0].mxu0
    %v155 = vadd.f32 0.0, %v154
    %v156 = vpop.f32.mrb[0].mxu0
    %157 = vmatprep.mubr.f32.mxu0 0.0
    %158 = vmatmul.mubr.f32.gmra.mrb[0].mxu0 %v59
    %v159 = vpop.f32.mrb[0].mxu0
    %v160 = vadd.f32 0.0, %v159
    %v161 = vpop.f32.mrb[0].mxu0
    %162 = vmatprep.mubr.f32.mxu0 0.0
    %163 = vmatmul.mubr.f32.gmra.mrb[0].mxu0 %v62
    %v164 = vpop.f32.mrb[0].mxu0
    %v165 = vadd.f32 0.0, %v164
    %v166 = vpop.f32.mrb[0].mxu0
    %167 = vmatprep.mubr.f32.mxu0 0.0
    %168 = vmatmul.mubr.f32.gmra.mrb[0].mxu0 %v65
    %v169 = vpop.f32.mrb[0].mxu0
    %v170 = vadd.f32 0.0, %v169
    %v171 = vpop.f32.mrb[0].mxu0
    %172 = vmatprep.mubr.f32.mxu0 0.0
    %173 = vmatmul.mubr.f32.gmra.mrb[0].mxu0 %v68
    %v174 = vpop.f32.mrb[0].mxu0
    %v175 = vadd.f32 0.0, %v174
    %v176 = vpop.f32.mrb[0].mxu0
    %177 = vmatprep.mubr.f32.mxu0 0.0
    %178 = vmatmul.mubr.f32.gmra.mrb[0].mxu0 %v71
    %v179 = vpop.f32.mrb[0].mxu0
    %v180 = vadd.f32 0.0, %v179
    %v181 = vpop.f32.mrb[0].mxu0
    %182 = vmatprep.mubr.f32.mxu0 0.0
    %183 = vmatmul.mubr.f32.gmra.mrb[0].mxu0 %v74
    %v184 = vpop.f32.mrb[0].mxu0
    %v185 = vadd.f32 0.0, %v184
    %v186 = vpop.f32.mrb[0].mxu0
    %187 = vmatprep.mubr.f32.mxu0 0.0
    %188 = vmatmul.mubr.f32.gmra.mrb[0].mxu0 %v77
    %v189 = vpop.f32.mrb[0].mxu0
    %v190 = vadd.f32 0.0, %v189
    %v191 = vpop.f32.mrb[0].mxu0
    %192 = vdwg.mxu0
    %v193 = vld [vmem:[%s2] sm:$0xff]
    %v194 = vld [vmem:[%s2 + $0x8] sm:$0xff]
    %v195 = vld [vmem:[%s2 + $0x10] sm:$0xff]
    %v196 = vld [vmem:[%s2 + $0x18] sm:$0xff]
    %v197 = vld [vmem:[%s2 + $0x20] sm:$0xff]
    %v198 = vld [vmem:[%s2 + $0x28] sm:$0xff]
    %v199 = vld [vmem:[%s2 + $0x30] sm:$0xff]
    %v200 = vld [vmem:[%s2 + $0x38] sm:$0xff]
    %v201 = vld [vmem:[%s2 + $0x40] sm:$0xff]
    %v202 = vld [vmem:[%s2 + $0x48] sm:$0xff]
    %v203 = vld [vmem:[%s2 + $0x50] sm:$0xff]
    %v204 = vld [vmem:[%s2 + $0x58] sm:$0xff]
    %v205 = vld [vmem:[%s2 + $0x60] sm:$0xff]
    %v206 = vld [vmem:[%s2 + $0x68] sm:$0xff]
    %v207 = vld [vmem:[%s2 + $0x70] sm:$0xff]
    %v208 = vld [vmem:[%s2 + $0x78] sm:$0x7]
    %s209 = scalar_lea.vmem %s2, 128
    %v210 = vld [vmem:[%s209] sm:$0xff]
    %v211 = vld [vmem:[%s209 + $0x8] sm:$0xff]
    %v212 = vld [vmem:[%s209 + $0x10] sm:$0xff]
    %v213 = vld [vmem:[%s209 + $0x18] sm:$0xff]
    %v214 = vld [vmem:[%s209 + $0x20] sm:$0xff]
    %v215 = vld [vmem:[%s209 + $0x28] sm:$0xff]
    %v216 = vld [vmem:[%s209 + $0x30] sm:$0xff]
    %v217 = vld [vmem:[%s209 + $0x38] sm:$0xff]
    %v218 = vld [vmem:[%s209 + $0x40] sm:$0xff]
    %v219 = vld [vmem:[%s209 + $0x48] sm:$0xff]
    %v220 = vld [vmem:[%s209 + $0x50] sm:$0xff]
    %v221 = vld [vmem:[%s209 + $0x58] sm:$0xff]
    %v222 = vld [vmem:[%s209 + $0x60] sm:$0xff]
    %v223 = vld [vmem:[%s209 + $0x68] sm:$0xff]
    %v224 = vld [vmem:[%s209 + $0x70] sm:$0xff]
    %v225 = vld [vmem:[%s209 + $0x78] sm:$0x7]
    %vm226 = vcmask 1006592
    %v228 = vsel %vm226, %v165, 0
    %v231 = vsel %vm226, %v170, 0
    %v234 = vsel %vm226, %v175, 0
    %vm236 = vcmask 1042432
    %v238 = vsel %vm236, %v225, 0
    %240 = vmatprep.subr.mxu0 0.0
    %241 = vmatpush1.msra.mxu0 %v210
    %242 = vmatprep.subr.mxu0 0.0
    %243 = vmatpush1.msra.mxu0 %v211
    %244 = vmatprep.subr.mxu0 0.0
    %245 = vmatpush1.msra.mxu0 %v212
    %246 = vmatprep.subr.mxu0 0.0
    %247 = vmatpush1.msra.mxu0 %v213
    %248 = vmatprep.subr.mxu0 0.0
    %249 = vmatpush1.msra.mxu0 %v214
    %250 = vmatprep.subr.mxu0 0.0
    %251 = vmatpush1.msra.mxu0 %v215
    %252 = vmatprep.subr.mxu0 0.0
    %253 = vmatpush1.msra.mxu0 %v216
    %254 = vmatprep.subr.mxu0 0.0
    %255 = vmatpush1.msra.mxu0 %v217
    %256 = vmatprep.subr.mxu0 0.0
    %257 = vmatpush1.msra.mxu0 %v218
    %258 = vmatprep.subr.mxu0 0.0
    %259 = vmatpush1.msra.mxu0 %v219
    %260 = vmatprep.subr.mxu0 0.0
    %261 = vmatpush1.msra.mxu0 %v220
    %262 = vmatprep.subr.mxu0 0.0
    %263 = vmatpush1.msra.mxu0 %v221
    %264 = vmatprep.subr.mxu0 0.0
    %265 = vmatpush1.msra.mxu0 %v222
    %266 = vmatprep.subr.mxu0 0.0
    %267 = vmatpush1.msra.mxu0 %v223
    %268 = vmatprep.subr.mxu0 0.0
    %269 = vmatpush1.msra.mxu0 %v224
    %270 = vmatprep.subr.mxu0 0.0
    %271 = vmatpush1.msra.mxu0 %v238
    %272 = vmatprep.subr.mxu0 0.0
    %273 = vmatpush1.msra.mxu0 0.0
    %274 = vmatprep.subr.mxu0 0.0
    %275 = vmatpush1.msra.mxu0 0.0
    %276 = vmatprep.subr.mxu0 0.0
    %277 = vmatpush1.msra.mxu0 0.0
    %278 = vmatprep.subr.mxu0 0.0
    %279 = vmatpush1.msra.mxu0 0.0
    %280 = vmatprep.subr.mxu0 0.0
    %281 = vmatpush1.msra.mxu0 0.0
    %282 = vmatprep.subr.mxu0 0.0
    %283 = vmatpush1.msra.mxu0 0.0
    %284 = vmatprep.subr.mxu0 0.0
    %285 = vmatpush1.msra.mxu0 0.0
    %286 = vmatprep.subr.mxu0 0.0
    %287 = vmatpush1.msra.mxu0 0.0
    %288 = vmatprep.subr.mxu0 0.0
    %289 = vmatpush1.msra.mxu0 0.0
    %290 = vmatprep.subr.mxu0 0.0
    %291 = vmatpush1.msra.mxu0 0.0
    %292 = vmatprep.subr.mxu0 0.0
    %293 = vmatpush1.msra.mxu0 0.0
    %294 = vmatprep.subr.mxu0 0.0
    %295 = vmatpush1.msra.mxu0 0.0
    %296 = vmatprep.subr.mxu0 0.0
    %297 = vmatpush1.msra.mxu0 0.0
    %298 = vmatprep.subr.mxu0 0.0
    %299 = vmatpush1.msra.mxu0 0.0
    %300 = vmatprep.subr.mxu0 0.0
    %301 = vmatpush1.msra.mxu0 0.0
    %302 = vmatprep.subr.mxu0 0.0
    %303 = vmatpush1.msra.mxu0 0.0
    %304 = vmatprep.mubr.f32.mxu0 0.0
    %305 = vmatmul.mubr.f32.gmra.mrb[0].mxu0 %v228
    %v306 = vpop.f32.mrb[0].mxu0
    %v307 = vadd.f32 0.0, %v306
    %v308 = vpop.f32.mrb[0].mxu0
    %309 = vmatprep.mubr.f32.mxu0 0.0
    %310 = vmatmul.mubr.f32.gmra.mrb[0].mxu0 %v231
    %v311 = vpop.f32.mrb[0].mxu0
    %v312 = vadd.f32 0.0, %v311
    %v313 = vpop.f32.mrb[0].mxu0
    %314 = vmatprep.mubr.f32.mxu0 0.0
    %315 = vmatmul.mubr.f32.gmra.mrb[0].mxu0 %v234
    %v316 = vpop.f32.mrb[0].mxu0
    %v317 = vadd.f32 0.0, %v316
    %v318 = vpop.f32.mrb[0].mxu0
    %319 = vdwg.mxu0
    %v321 = vsel %vm226, %v150, 0
    %v324 = vsel %vm226, %v155, 0
    %v327 = vsel %vm226, %v160, 0
    %v330 = vsel %vm236, %v208, 0
    %332 = vmatprep.subr.mxu0 0.0
    %333 = vmatpush1.msra.mxu0 %v193
    %334 = vmatprep.subr.mxu0 0.0
    %335 = vmatpush1.msra.mxu0 %v194
    %336 = vmatprep.subr.mxu0 0.0
    %337 = vmatpush1.msra.mxu0 %v195
    %338 = vmatprep.subr.mxu0 0.0
    %339 = vmatpush1.msra.mxu0 %v196
    %340 = vmatprep.subr.mxu0 0.0
    %341 = vmatpush1.msra.mxu0 %v197
    %342 = vmatprep.subr.mxu0 0.0
    %343 = vmatpush1.msra.mxu0 %v198
    %344 = vmatprep.subr.mxu0 0.0
    %345 = vmatpush1.msra.mxu0 %v199
    %346 = vmatprep.subr.mxu0 0.0
    %347 = vmatpush1.msra.mxu0 %v200
    %348 = vmatprep.subr.mxu0 0.0
    %349 = vmatpush1.msra.mxu0 %v201
    %350 = vmatprep.subr.mxu0 0.0
    %351 = vmatpush1.msra.mxu0 %v202
    %352 = vmatprep.subr.mxu0 0.0
    %353 = vmatpush1.msra.mxu0 %v203
    %354 = vmatprep.subr.mxu0 0.0
    %355 = vmatpush1.msra.mxu0 %v204
    %356 = vmatprep.subr.mxu0 0.0
    %357 = vmatpush1.msra.mxu0 %v205
    %358 = vmatprep.subr.mxu0 0.0
    %359 = vmatpush1.msra.mxu0 %v206
    %360 = vmatprep.subr.mxu0 0.0
    %361 = vmatpush1.msra.mxu0 %v207
    %362 = vmatprep.subr.mxu0 0.0
    %363 = vmatpush1.msra.mxu0 %v330
    %364 = vmatprep.subr.mxu0 0.0
    %365 = vmatpush1.msra.mxu0 0.0
    %366 = vmatprep.subr.mxu0 0.0
    %367 = vmatpush1.msra.mxu0 0.0
    %368 = vmatprep.subr.mxu0 0.0
    %369 = vmatpush1.msra.mxu0 0.0
    %370 = vmatprep.subr.mxu0 0.0
    %371 = vmatpush1.msra.mxu0 0.0
    %372 = vmatprep.subr.mxu0 0.0
    %373 = vmatpush1.msra.mxu0 0.0
    %374 = vmatprep.subr.mxu0 0.0
    %375 = vmatpush1.msra.mxu0 0.0
    %376 = vmatprep.subr.mxu0 0.0
    %377 = vmatpush1.msra.mxu0 0.0
    %378 = vmatprep.subr.mxu0 0.0
    %379 = vmatpush1.msra.mxu0 0.0
    %380 = vmatprep.subr.mxu0 0.0
    %381 = vmatpush1.msra.mxu0 0.0
    %382 = vmatprep.subr.mxu0 0.0
    %383 = vmatpush1.msra.mxu0 0.0
    %384 = vmatprep.subr.mxu0 0.0
    %385 = vmatpush1.msra.mxu0 0.0
    %386 = vmatprep.subr.mxu0 0.0
    %387 = vmatpush1.msra.mxu0 0.0
    %388 = vmatprep.subr.mxu0 0.0
    %389 = vmatpush1.msra.mxu0 0.0
    %390 = vmatprep.subr.mxu0 0.0
    %391 = vmatpush1.msra.mxu0 0.0
    %392 = vmatprep.subr.mxu0 0.0
    %393 = vmatpush1.msra.mxu0 0.0
    %394 = vmatprep.subr.mxu0 0.0
    %395 = vmatpush1.msra.mxu0 0.0
    %396 = vmatprep.mubr.f32.mxu0 0.0
    %397 = vmatmul.mubr.f32.gmra.mrb[0].mxu0 %v321
    %v398 = vpop.f32.mrb[0].mxu0
    %v399 = vadd.f32 %v307, %v398
    %v400 = vpop.f32.mrb[0].mxu0
    %401 = vmatprep.mubr.f32.mxu0 0.0
    %402 = vmatmul.mubr.f32.gmra.mrb[0].mxu0 %v324
    %v403 = vpop.f32.mrb[0].mxu0
    %v404 = vadd.f32 %v312, %v403
    %v405 = vpop.f32.mrb[0].mxu0
    %406 = vmatprep.mubr.f32.mxu0 0.0
    %407 = vmatmul.mubr.f32.gmra.mrb[0].mxu0 %v327
    %v408 = vpop.f32.mrb[0].mxu0
    %v409 = vadd.f32 %v317, %v408
    %v410 = vpop.f32.mrb[0].mxu0
    %411 = vdwg.mxu0
    %s412 = scalar_lea.vmem %s2, 256
    %v413 = vld [vmem:[%s412] sm:$0xff]
    %v414 = vld [vmem:[%s412 + $0x8] sm:$0xff]
    %v415 = vld [vmem:[%s412 + $0x10] sm:$0xff]
    %v416 = vld [vmem:[%s412 + $0x18] sm:$0xff]
    %v417 = vld [vmem:[%s412 + $0x20] sm:$0xff]
    %v418 = vld [vmem:[%s412 + $0x28] sm:$0xff]
    %v419 = vld [vmem:[%s412 + $0x30] sm:$0xff]
    %v420 = vld [vmem:[%s412 + $0x38] sm:$0xff]
    %v421 = vld [vmem:[%s412 + $0x40] sm:$0xff]
    %v422 = vld [vmem:[%s412 + $0x48] sm:$0xff]
    %v423 = vld [vmem:[%s412 + $0x50] sm:$0xff]
    %v424 = vld [vmem:[%s412 + $0x58] sm:$0xff]
    %v425 = vld [vmem:[%s412 + $0x60] sm:$0xff]
    %v426 = vld [vmem:[%s412 + $0x68] sm:$0xff]
    %v427 = vld [vmem:[%s412 + $0x70] sm:$0xff]
    %v428 = vld [vmem:[%s412 + $0x78] sm:$0x7]
    %v430 = vsel %vm226, %v180, 0
    %v433 = vsel %vm226, %v185, 0
    %v436 = vsel %vm226, %v190, 0
    %v439 = vsel %vm236, %v428, 0
    %441 = vmatprep.subr.mxu0 0.0
    %442 = vmatpush1.msra.mxu0 %v413
    %443 = vmatprep.subr.mxu0 0.0
    %444 = vmatpush1.msra.mxu0 %v414
    %445 = vmatprep.subr.mxu0 0.0
    %446 = vmatpush1.msra.mxu0 %v415
    %447 = vmatprep.subr.mxu0 0.0
    %448 = vmatpush1.msra.mxu0 %v416
    %449 = vmatprep.subr.mxu0 0.0
    %450 = vmatpush1.msra.mxu0 %v417
    %451 = vmatprep.subr.mxu0 0.0
    %452 = vmatpush1.msra.mxu0 %v418
    %453 = vmatprep.subr.mxu0 0.0
    %454 = vmatpush1.msra.mxu0 %v419
    %455 = vmatprep.subr.mxu0 0.0
    %456 = vmatpush1.msra.mxu0 %v420
    %457 = vmatprep.subr.mxu0 0.0
    %458 = vmatpush1.msra.mxu0 %v421
    %459 = vmatprep.subr.mxu0 0.0
    %460 = vmatpush1.msra.mxu0 %v422
    %461 = vmatprep.subr.mxu0 0.0
    %462 = vmatpush1.msra.mxu0 %v423
    %463 = vmatprep.subr.mxu0 0.0
    %464 = vmatpush1.msra.mxu0 %v424
    %465 = vmatprep.subr.mxu0 0.0
    %466 = vmatpush1.msra.mxu0 %v425
    %467 = vmatprep.subr.mxu0 0.0
    %468 = vmatpush1.msra.mxu0 %v426
    %469 = vmatprep.subr.mxu0 0.0
    %470 = vmatpush1.msra.mxu0 %v427
    %471 = vmatprep.subr.mxu0 0.0
    %472 = vmatpush1.msra.mxu0 %v439
    %473 = vmatprep.subr.mxu0 0.0
    %474 = vmatpush1.msra.mxu0 0.0
    %475 = vmatprep.subr.mxu0 0.0
    %476 = vmatpush1.msra.mxu0 0.0
    %477 = vmatprep.subr.mxu0 0.0
    %478 = vmatpush1.msra.mxu0 0.0
    %479 = vmatprep.subr.mxu0 0.0
    %480 = vmatpush1.msra.mxu0 0.0
    %481 = vmatprep.subr.mxu0 0.0
    %482 = vmatpush1.msra.mxu0 0.0
    %483 = vmatprep.subr.mxu0 0.0
    %484 = vmatpush1.msra.mxu0 0.0
    %485 = vmatprep.subr.mxu0 0.0
    %486 = vmatpush1.msra.mxu0 0.0
    %487 = vmatprep.subr.mxu0 0.0
    %488 = vmatpush1.msra.mxu0 0.0
    %489 = vmatprep.subr.mxu0 0.0
    %490 = vmatpush1.msra.mxu0 0.0
    %491 = vmatprep.subr.mxu0 0.0
    %492 = vmatpush1.msra.mxu0 0.0
    %493 = vmatprep.subr.mxu0 0.0
    %494 = vmatpush1.msra.mxu0 0.0
    %495 = vmatprep.subr.mxu0 0.0
    %496 = vmatpush1.msra.mxu0 0.0
    %497 = vmatprep.subr.mxu0 0.0
    %498 = vmatpush1.msra.mxu0 0.0
    %499 = vmatprep.subr.mxu0 0.0
    %500 = vmatpush1.msra.mxu0 0.0
    %501 = vmatprep.subr.mxu0 0.0
    %502 = vmatpush1.msra.mxu0 0.0
    %503 = vmatprep.subr.mxu0 0.0
    %504 = vmatpush1.msra.mxu0 0.0
    %505 = vmatprep.mubr.f32.mxu0 0.0
    %506 = vmatmul.mubr.f32.gmra.mrb[0].mxu0 %v430
    %v507 = vpop.f32.mrb[0].mxu0
    %v508 = vadd.f32 0.0, %v507
    %v509 = vpop.f32.mrb[0].mxu0
    %510 = vmatprep.mubr.f32.mxu0 0.0
    %511 = vmatmul.mubr.f32.gmra.mrb[0].mxu0 %v433
    %v512 = vpop.f32.mrb[0].mxu0
    %v513 = vadd.f32 0.0, %v512
    %v514 = vpop.f32.mrb[0].mxu0
    %515 = vmatprep.mubr.f32.mxu0 0.0
    %516 = vmatmul.mubr.f32.gmra.mrb[0].mxu0 %v436
    %v517 = vpop.f32.mrb[0].mxu0
    %v518 = vadd.f32 0.0, %v517
    %v519 = vpop.f32.mrb[0].mxu0
    %520 = vdwg.mxu0
    %v521 = vadd.f32 %v399, %v508
    %v522 = vadd.f32 %v404, %v513
    %v523 = vadd.f32 %v409, %v518
    %v524 = vld [vmem:[%s3] sm:$0x1]
    %v526 = vlaneseq
    %v527 = vshrl.u32 %v526, 7
    %v528 = vsub.s32 0, %v527
    %v529 = vrot.slane %v524, %v528
    %v531 = vadd.f32 %v521, %v529
    %v532 = vadd.f32 %v522, %v529
    %v533 = vadd.f32 %v523, %v529
    %vm534 = vcmp.ge.f32.partialorder %v531, 0.0
    %vm535 = vcmp.ge.f32.partialorder %v532, 0.0
    %vm536 = vcmp.ge.f32.partialorder %v533, 0.0
    %v537 = vmul.f32 %v531, 0.01
    %v538 = vmul.f32 %v532, 0.01
    %v539 = vmul.f32 %v533, 0.01
    %v540 = vsel %vm534, %v531, %v537
    %v541 = vsel %vm535, %v532, %v538
    %v542 = vsel %vm536, %v533, %v539
    %v543 = vld [vmem:[%s4] sm:$0xff]
    %v544 = vld [vmem:[%s4 + $0x8] sm:$0xff]
    %v545 = vld [vmem:[%s4 + $0x10] sm:$0xff]
    %vm546 = vcmask 195584
    %v548 = vsel %vm546, %v543, 0
    %v551 = vsel %vm546, %v544, 0
    %v554 = vsel %vm546, %v545, 0
    %556 = vmatprep.subr.mxu0 0.0
    %557 = vmatpush1.msra.mxu0 %v540
    %558 = vmatprep.subr.mxu0 0.0
    %559 = vmatpush1.msra.mxu0 %v541
    %560 = vmatprep.subr.mxu0 0.0
    %561 = vmatpush1.msra.mxu0 %v542
    %562 = vmatprep.subr.mxu0 0.0
    %563 = vmatpush1.msra.mxu0 0.0
    %564 = vmatprep.subr.mxu0 0.0
    %565 = vmatpush1.msra.mxu0 0.0
    %566 = vmatprep.subr.mxu0 0.0
    %567 = vmatpush1.msra.mxu0 0.0
    %568 = vmatprep.subr.mxu0 0.0
    %569 = vmatpush1.msra.mxu0 0.0
    %570 = vmatprep.subr.mxu0 0.0
    %571 = vmatpush1.msra.mxu0 0.0
    %572 = vmatprep.subr.mxu0 0.0
    %573 = vmatpush1.msra.mxu0 0.0
    %574 = vmatprep.subr.mxu0 0.0
    %575 = vmatpush1.msra.mxu0 0.0
    %576 = vmatprep.subr.mxu0 0.0
    %577 = vmatpush1.msra.mxu0 0.0
    %578 = vmatprep.subr.mxu0 0.0
    %579 = vmatpush1.msra.mxu0 0.0
    %580 = vmatprep.subr.mxu0 0.0
    %581 = vmatpush1.msra.mxu0 0.0
    %582 = vmatprep.subr.mxu0 0.0
    %583 = vmatpush1.msra.mxu0 0.0
    %584 = vmatprep.subr.mxu0 0.0
    %585 = vmatpush1.msra.mxu0 0.0
    %586 = vmatprep.subr.mxu0 0.0
    %587 = vmatpush1.msra.mxu0 0.0
    %588 = vmatprep.subr.mxu0 0.0
    %589 = vmatpush1.msra.mxu0 0.0
    %590 = vmatprep.subr.mxu0 0.0
    %591 = vmatpush1.msra.mxu0 0.0
    %592 = vmatprep.subr.mxu0 0.0
    %593 = vmatpush1.msra.mxu0 0.0
    %594 = vmatprep.subr.mxu0 0.0
    %595 = vmatpush1.msra.mxu0 0.0
    %596 = vmatprep.subr.mxu0 0.0
    %597 = vmatpush1.msra.mxu0 0.0
    %598 = vmatprep.subr.mxu0 0.0
    %599 = vmatpush1.msra.mxu0 0.0
    %600 = vmatprep.subr.mxu0 0.0
    %601 = vmatpush1.msra.mxu0 0.0
    %602 = vmatprep.subr.mxu0 0.0
    %603 = vmatpush1.msra.mxu0 0.0
    %604 = vmatprep.subr.mxu0 0.0
    %605 = vmatpush1.msra.mxu0 0.0
    %606 = vmatprep.subr.mxu0 0.0
    %607 = vmatpush1.msra.mxu0 0.0
    %608 = vmatprep.subr.mxu0 0.0
    %609 = vmatpush1.msra.mxu0 0.0
    %610 = vmatprep.subr.mxu0 0.0
    %611 = vmatpush1.msra.mxu0 0.0
    %612 = vmatprep.subr.mxu0 0.0
    %613 = vmatpush1.msra.mxu0 0.0
    %614 = vmatprep.subr.mxu0 0.0
    %615 = vmatpush1.msra.mxu0 0.0
    %616 = vmatprep.subr.mxu0 0.0
    %617 = vmatpush1.msra.mxu0 0.0
    %618 = vmatprep.subr.mxu0 0.0
    %619 = vmatpush1.msra.mxu0 0.0
    %620 = vmatprep.mubr.f32.mxu0 0.0
    %621 = vmatmul.mubr.f32.gmra.mrb[0].mxu0 %v548
    %v622 = vpop.f32.mrb[0].mxu0
    %v623 = vadd.f32 0.0, %v622
    %v624 = vpop.f32.mrb[0].mxu0
    %625 = vmatprep.mubr.f32.mxu0 0.0
    %626 = vmatmul.mubr.f32.gmra.mrb[0].mxu0 %v551
    %v627 = vpop.f32.mrb[0].mxu0
    %v628 = vadd.f32 0.0, %v627
    %v629 = vpop.f32.mrb[0].mxu0
    %630 = vmatprep.mubr.f32.mxu0 0.0
    %631 = vmatmul.mubr.f32.gmra.mrb[0].mxu0 %v554
    %v632 = vpop.f32.mrb[0].mxu0
    %v633 = vadd.f32 0.0, %v632
    %v634 = vpop.f32.mrb[0].mxu0
    %635 = vdwg.mxu0
    %v636 = vld [vmem:[%s5] sm:$0xff]
    %v637 = vld [vmem:[%s5 + $0x8] sm:$0xff]
    %v638 = vld [vmem:[%s5 + $0x10] sm:$0xff]
    %v639 = vld [vmem:[%s5 + $0x18] sm:$0xff]
    %v640 = vld [vmem:[%s5 + $0x20] sm:$0xff]
    %v641 = vld [vmem:[%s5 + $0x28] sm:$0xff]
    %v642 = vld [vmem:[%s5 + $0x30] sm:$0xff]
    %v643 = vld [vmem:[%s5 + $0x38] sm:$0xff]
    %v644 = vld [vmem:[%s5 + $0x40] sm:$0xff]
    %v645 = vld [vmem:[%s5 + $0x48] sm:$0xff]
    %s646 = scalar_lea.vmem %s5, 80
    %v647 = vld [vmem:[%s646] sm:$0xff]
    %v648 = vld [vmem:[%s646 + $0x8] sm:$0xff]
    %v649 = vld [vmem:[%s646 + $0x10] sm:$0xff]
    %v650 = vld [vmem:[%s646 + $0x18] sm:$0xff]
    %v651 = vld [vmem:[%s646 + $0x20] sm:$0xff]
    %v652 = vld [vmem:[%s646 + $0x28] sm:$0xff]
    %v653 = vld [vmem:[%s646 + $0x30] sm:$0xff]
    %v654 = vld [vmem:[%s646 + $0x38] sm:$0xff]
    %v655 = vld [vmem:[%s646 + $0x40] sm:$0xff]
    %v656 = vld [vmem:[%s646 + $0x48] sm:$0xff]
    %vm657 = vcmask 654336
    %v659 = vsel %vm657, %v628, 0
    %661 = vmatprep.subr.mxu0 0.0
    %662 = vmatpush1.msra.mxu0 %v647
    %663 = vmatprep.subr.mxu0 0.0
    %664 = vmatpush1.msra.mxu0 %v648
    %665 = vmatprep.subr.mxu0 0.0
    %666 = vmatpush1.msra.mxu0 %v649
    %667 = vmatprep.subr.mxu0 0.0
    %668 = vmatpush1.msra.mxu0 %v650
    %669 = vmatprep.subr.mxu0 0.0
    %670 = vmatpush1.msra.mxu0 %v651
    %671 = vmatprep.subr.mxu0 0.0
    %672 = vmatpush1.msra.mxu0 %v652
    %673 = vmatprep.subr.mxu0 0.0
    %674 = vmatpush1.msra.mxu0 %v653
    %675 = vmatprep.subr.mxu0 0.0
    %676 = vmatpush1.msra.mxu0 %v654
    %677 = vmatprep.subr.mxu0 0.0
    %678 = vmatpush1.msra.mxu0 %v655
    %679 = vmatprep.subr.mxu0 0.0
    %680 = vmatpush1.msra.mxu0 %v656
    %681 = vmatprep.subr.mxu0 0.0
    %682 = vmatpush1.msra.mxu0 0.0
    %683 = vmatprep.subr.mxu0 0.0
    %684 = vmatpush1.msra.mxu0 0.0
    %685 = vmatprep.subr.mxu0 0.0
    %686 = vmatpush1.msra.mxu0 0.0
    %687 = vmatprep.subr.mxu0 0.0
    %688 = vmatpush1.msra.mxu0 0.0
    %689 = vmatprep.subr.mxu0 0.0
    %690 = vmatpush1.msra.mxu0 0.0
    %691 = vmatprep.subr.mxu0 0.0
    %692 = vmatpush1.msra.mxu0 0.0
    %693 = vmatprep.subr.mxu0 0.0
    %694 = vmatpush1.msra.mxu0 0.0
    %695 = vmatprep.subr.mxu0 0.0
    %696 = vmatpush1.msra.mxu0 0.0
    %697 = vmatprep.subr.mxu0 0.0
    %698 = vmatpush1.msra.mxu0 0.0
    %699 = vmatprep.subr.mxu0 0.0
    %700 = vmatpush1.msra.mxu0 0.0
    %701 = vmatprep.subr.mxu0 0.0
    %702 = vmatpush1.msra.mxu0 0.0
    %703 = vmatprep.subr.mxu0 0.0
    %704 = vmatpush1.msra.mxu0 0.0
    %705 = vmatprep.subr.mxu0 0.0
    %706 = vmatpush1.msra.mxu0 0.0
    %707 = vmatprep.subr.mxu0 0.0
    %708 = vmatpush1.msra.mxu0 0.0
    %709 = vmatprep.subr.mxu0 0.0
    %710 = vmatpush1.msra.mxu0 0.0
    %711 = vmatprep.subr.mxu0 0.0
    %712 = vmatpush1.msra.mxu0 0.0
    %713 = vmatprep.subr.mxu0 0.0
    %714 = vmatpush1.msra.mxu0 0.0
    %715 = vmatprep.subr.mxu0 0.0
    %716 = vmatpush1.msra.mxu0 0.0
    %717 = vmatprep.subr.mxu0 0.0
    %718 = vmatpush1.msra.mxu0 0.0
    %719 = vmatprep.subr.mxu0 0.0
    %720 = vmatpush1.msra.mxu0 0.0
    %721 = vmatprep.subr.mxu0 0.0
    %722 = vmatpush1.msra.mxu0 0.0
    %723 = vmatprep.subr.mxu0 0.0
    %724 = vmatpush1.msra.mxu0 0.0
    %725 = vmatprep.mubr.f32.mxu0 0.0
    %726 = vmatmul.mubr.f32.gmra.mrb[0].mxu0 %v659
    %v727 = vpop.f32.mrb[0].mxu0
    %v728 = vadd.f32 0.0, %v727
    %v729 = vpop.f32.mrb[0].mxu0
    %730 = vdwg.mxu0
    %v732 = vsel %vm657, %v623, 0
    %734 = vmatprep.subr.mxu0 0.0
    %735 = vmatpush1.msra.mxu0 %v636
    %736 = vmatprep.subr.mxu0 0.0
    %737 = vmatpush1.msra.mxu0 %v637
    %738 = vmatprep.subr.mxu0 0.0
    %739 = vmatpush1.msra.mxu0 %v638
    %740 = vmatprep.subr.mxu0 0.0
    %741 = vmatpush1.msra.mxu0 %v639
    %742 = vmatprep.subr.mxu0 0.0
    %743 = vmatpush1.msra.mxu0 %v640
    %744 = vmatprep.subr.mxu0 0.0
    %745 = vmatpush1.msra.mxu0 %v641
    %746 = vmatprep.subr.mxu0 0.0
    %747 = vmatpush1.msra.mxu0 %v642
    %748 = vmatprep.subr.mxu0 0.0
    %749 = vmatpush1.msra.mxu0 %v643
    %750 = vmatprep.subr.mxu0 0.0
    %751 = vmatpush1.msra.mxu0 %v644
    %752 = vmatprep.subr.mxu0 0.0
    %753 = vmatpush1.msra.mxu0 %v645
    %754 = vmatprep.subr.mxu0 0.0
    %755 = vmatpush1.msra.mxu0 0.0
    %756 = vmatprep.subr.mxu0 0.0
    %757 = vmatpush1.msra.mxu0 0.0
    %758 = vmatprep.subr.mxu0 0.0
    %759 = vmatpush1.msra.mxu0 0.0
    %760 = vmatprep.subr.mxu0 0.0
    %761 = vmatpush1.msra.mxu0 0.0
    %762 = vmatprep.subr.mxu0 0.0
    %763 = vmatpush1.msra.mxu0 0.0
    %764 = vmatprep.subr.mxu0 0.0
    %765 = vmatpush1.msra.mxu0 0.0
    %766 = vmatprep.subr.mxu0 0.0
    %767 = vmatpush1.msra.mxu0 0.0
    %768 = vmatprep.subr.mxu0 0.0
    %769 = vmatpush1.msra.mxu0 0.0
    %770 = vmatprep.subr.mxu0 0.0
    %771 = vmatpush1.msra.mxu0 0.0
    %772 = vmatprep.subr.mxu0 0.0
    %773 = vmatpush1.msra.mxu0 0.0
    %774 = vmatprep.subr.mxu0 0.0
    %775 = vmatpush1.msra.mxu0 0.0
    %776 = vmatprep.subr.mxu0 0.0
    %777 = vmatpush1.msra.mxu0 0.0
    %778 = vmatprep.subr.mxu0 0.0
    %779 = vmatpush1.msra.mxu0 0.0
    %780 = vmatprep.subr.mxu0 0.0
    %781 = vmatpush1.msra.mxu0 0.0
    %782 = vmatprep.subr.mxu0 0.0
    %783 = vmatpush1.msra.mxu0 0.0
    %784 = vmatprep.subr.mxu0 0.0
    %785 = vmatpush1.msra.mxu0 0.0
    %786 = vmatprep.subr.mxu0 0.0
    %787 = vmatpush1.msra.mxu0 0.0
    %788 = vmatprep.subr.mxu0 0.0
    %789 = vmatpush1.msra.mxu0 0.0
    %790 = vmatprep.subr.mxu0 0.0
    %791 = vmatpush1.msra.mxu0 0.0
    %792 = vmatprep.subr.mxu0 0.0
    %793 = vmatpush1.msra.mxu0 0.0
    %794 = vmatprep.subr.mxu0 0.0
    %795 = vmatpush1.msra.mxu0 0.0
    %796 = vmatprep.subr.mxu0 0.0
    %797 = vmatpush1.msra.mxu0 0.0
    %798 = vmatprep.mubr.f32.mxu0 0.0
    %799 = vmatmul.mubr.f32.gmra.mrb[0].mxu0 %v732
    %v800 = vpop.f32.mrb[0].mxu0
    %v801 = vadd.f32 %v728, %v800
    %v802 = vpop.f32.mrb[0].mxu0
    %803 = vdwg.mxu0
    %s804 = scalar_lea.vmem %s5, 160
    %v805 = vld [vmem:[%s804] sm:$0xff]
    %v806 = vld [vmem:[%s804 + $0x8] sm:$0xff]
    %v807 = vld [vmem:[%s804 + $0x10] sm:$0xff]
    %v808 = vld [vmem:[%s804 + $0x18] sm:$0xff]
    %v809 = vld [vmem:[%s804 + $0x20] sm:$0xff]
    %v810 = vld [vmem:[%s804 + $0x28] sm:$0xff]
    %v811 = vld [vmem:[%s804 + $0x30] sm:$0xff]
    %v812 = vld [vmem:[%s804 + $0x38] sm:$0xff]
    %v813 = vld [vmem:[%s804 + $0x40] sm:$0xff]
    %v814 = vld [vmem:[%s804 + $0x48] sm:$0xff]
    %v816 = vsel %vm657, %v633, 0
    %818 = vmatprep.subr.mxu0 0.0
    %819 = vmatpush1.msra.mxu0 %v805
    %820 = vmatprep.subr.mxu0 0.0
    %821 = vmatpush1.msra.mxu0 %v806
    %822 = vmatprep.subr.mxu0 0.0
    %823 = vmatpush1.msra.mxu0 %v807
    %824 = vmatprep.subr.mxu0 0.0
    %825 = vmatpush1.msra.mxu0 %v808
    %826 = vmatprep.subr.mxu0 0.0
    %827 = vmatpush1.msra.mxu0 %v809
    %828 = vmatprep.subr.mxu0 0.0
    %829 = vmatpush1.msra.mxu0 %v810
    %830 = vmatprep.subr.mxu0 0.0
    %831 = vmatpush1.msra.mxu0 %v811
    %832 = vmatprep.subr.mxu0 0.0
    %833 = vmatpush1.msra.mxu0 %v812
    %834 = vmatprep.subr.mxu0 0.0
    %835 = vmatpush1.msra.mxu0 %v813
    %836 = vmatprep.subr.mxu0 0.0
    %837 = vmatpush1.msra.mxu0 %v814
    %838 = vmatprep.subr.mxu0 0.0
    %839 = vmatpush1.msra.mxu0 0.0
    %840 = vmatprep.subr.mxu0 0.0
    %841 = vmatpush1.msra.mxu0 0.0
    %842 = vmatprep.subr.mxu0 0.0
    %843 = vmatpush1.msra.mxu0 0.0
    %844 = vmatprep.subr.mxu0 0.0
    %845 = vmatpush1.msra.mxu0 0.0
    %846 = vmatprep.subr.mxu0 0.0
    %847 = vmatpush1.msra.mxu0 0.0
    %848 = vmatprep.subr.mxu0 0.0
    %849 = vmatpush1.msra.mxu0 0.0
    %850 = vmatprep.subr.mxu0 0.0
    %851 = vmatpush1.msra.mxu0 0.0
    %852 = vmatprep.subr.mxu0 0.0
    %853 = vmatpush1.msra.mxu0 0.0
    %854 = vmatprep.subr.mxu0 0.0
    %855 = vmatpush1.msra.mxu0 0.0
    %856 = vmatprep.subr.mxu0 0.0
    %857 = vmatpush1.msra.mxu0 0.0
    %858 = vmatprep.subr.mxu0 0.0
    %859 = vmatpush1.msra.mxu0 0.0
    %860 = vmatprep.subr.mxu0 0.0
    %861 = vmatpush1.msra.mxu0 0.0
    %862 = vmatprep.subr.mxu0 0.0
    %863 = vmatpush1.msra.mxu0 0.0
    %864 = vmatprep.subr.mxu0 0.0
    %865 = vmatpush1.msra.mxu0 0.0
    %866 = vmatprep.subr.mxu0 0.0
    %867 = vmatpush1.msra.mxu0 0.0
    %868 = vmatprep.subr.mxu0 0.0
    %869 = vmatpush1.msra.mxu0 0.0
    %870 = vmatprep.subr.mxu0 0.0
    %871 = vmatpush1.msra.mxu0 0.0
    %872 = vmatprep.subr.mxu0 0.0
    %873 = vmatpush1.msra.mxu0 0.0
    %874 = vmatprep.subr.mxu0 0.0
    %875 = vmatpush1.msra.mxu0 0.0
    %876 = vmatprep.subr.mxu0 0.0
    %877 = vmatpush1.msra.mxu0 0.0
    %878 = vmatprep.subr.mxu0 0.0
    %879 = vmatpush1.msra.mxu0 0.0
    %880 = vmatprep.subr.mxu0 0.0
    %881 = vmatpush1.msra.mxu0 0.0
    %882 = vmatprep.mubr.f32.mxu0 0.0
    %883 = vmatmul.mubr.f32.gmra.mrb[0].mxu0 %v816
    %v884 = vpop.f32.mrb[0].mxu0
    %v885 = vadd.f32 0.0, %v884
    %v886 = vpop.f32.mrb[0].mxu0
    %887 = vdwg.mxu0
    %v888 = vadd.f32 %v801, %v885
    %v889 = vld [vmem:[%s6] sm:$0x1]
    %v891 = vlaneseq
    %v892 = vshrl.u32 %v891, 7
    %v893 = vsub.s32 0, %v892
    %v894 = vrot.slane %v889, %v893
    %v896 = vadd.f32 %v888, %v894
    %vm897 = vcmp.ge.f32.partialorder %v896, 0.0
    %v898 = vmul.f32 %v896, 0.01
    %v899 = vsel %vm897, %v896, %v898
    %v900 = vld [vmem:[%s7] sm:$0xff]
    %v901 = vld [vmem:[%s7 + $0x8] sm:$0xff]
    %vm902 = vcmask 64512
    %v904 = vsel %vm902, %v900, 0
    %v907 = vsel %vm902, %v901, 0
    %909 = vmatprep.subr.mxu0 0.0
    %910 = vmatpush1.msra.mxu0 %v899
    %911 = vmatprep.subr.mxu0 0.0
    %912 = vmatpush1.msra.mxu0 0.0
    %913 = vmatprep.subr.mxu0 0.0
    %914 = vmatpush1.msra.mxu0 0.0
    %915 = vmatprep.subr.mxu0 0.0
    %916 = vmatpush1.msra.mxu0 0.0
    %917 = vmatprep.subr.mxu0 0.0
    %918 = vmatpush1.msra.mxu0 0.0
    %919 = vmatprep.subr.mxu0 0.0
    %920 = vmatpush1.msra.mxu0 0.0
    %921 = vmatprep.subr.mxu0 0.0
    %922 = vmatpush1.msra.mxu0 0.0
    %923 = vmatprep.subr.mxu0 0.0
    %924 = vmatpush1.msra.mxu0 0.0
    %925 = vmatprep.subr.mxu0 0.0
    %926 = vmatpush1.msra.mxu0 0.0
    %927 = vmatprep.subr.mxu0 0.0
    %928 = vmatpush1.msra.mxu0 0.0
    %929 = vmatprep.subr.mxu0 0.0
    %930 = vmatpush1.msra.mxu0 0.0
    %931 = vmatprep.subr.mxu0 0.0
    %932 = vmatpush1.msra.mxu0 0.0
    %933 = vmatprep.subr.mxu0 0.0
    %934 = vmatpush1.msra.mxu0 0.0
    %935 = vmatprep.subr.mxu0 0.0
    %936 = vmatpush1.msra.mxu0 0.0
    %937 = vmatprep.subr.mxu0 0.0
    %938 = vmatpush1.msra.mxu0 0.0
    %939 = vmatprep.subr.mxu0 0.0
    %940 = vmatpush1.msra.mxu0 0.0
    %941 = vmatprep.subr.mxu0 0.0
    %942 = vmatpush1.msra.mxu0 0.0
    %943 = vmatprep.subr.mxu0 0.0
    %944 = vmatpush1.msra.mxu0 0.0
    %945 = vmatprep.subr.mxu0 0.0
    %946 = vmatpush1.msra.mxu0 0.0
    %947 = vmatprep.subr.mxu0 0.0
    %948 = vmatpush1.msra.mxu0 0.0
    %949 = vmatprep.subr.mxu0 0.0
    %950 = vmatpush1.msra.mxu0 0.0
    %951 = vmatprep.subr.mxu0 0.0
    %952 = vmatpush1.msra.mxu0 0.0
    %953 = vmatprep.subr.mxu0 0.0
    %954 = vmatpush1.msra.mxu0 0.0
    %955 = vmatprep.subr.mxu0 0.0
    %956 = vmatpush1.msra.mxu0 0.0
    %957 = vmatprep.subr.mxu0 0.0
    %958 = vmatpush1.msra.mxu0 0.0
    %959 = vmatprep.subr.mxu0 0.0
    %960 = vmatpush1.msra.mxu0 0.0
    %961 = vmatprep.subr.mxu0 0.0
    %962 = vmatpush1.msra.mxu0 0.0
    %963 = vmatprep.subr.mxu0 0.0
    %964 = vmatpush1.msra.mxu0 0.0
    %965 = vmatprep.subr.mxu0 0.0
    %966 = vmatpush1.msra.mxu0 0.0
    %967 = vmatprep.subr.mxu0 0.0
    %968 = vmatpush1.msra.mxu0 0.0
    %969 = vmatprep.subr.mxu0 0.0
    %970 = vmatpush1.msra.mxu0 0.0
    %971 = vmatprep.subr.mxu0 0.0
    %972 = vmatpush1.msra.mxu0 0.0
    %973 = vmatprep.mubr.f32.mxu0 0.0
    %974 = vmatmul.mubr.f32.gmra.mrb[0].mxu0 %v904
    %v975 = vpop.f32.mrb[0].mxu0
    %v976 = vadd.f32 0.0, %v975
    %v977 = vpop.f32.mrb[0].mxu0
    %978 = vmatprep.mubr.f32.mxu0 0.0
    %979 = vmatmul.mubr.f32.gmra.mrb[0].mxu0 %v907
    %v980 = vpop.f32.mrb[0].mxu0
    %v981 = vadd.f32 0.0, %v980
    %v982 = vpop.f32.mrb[0].mxu0
    %983 = vdwg.mxu0
    %v984 = vld [vmem:[%s8] sm:$0xff]
    %v985 = vld [vmem:[%s8 + $0x8] sm:$0xff]
    %v986 = vld [vmem:[%s8 + $0x10] sm:$0xff]
    %v987 = vld [vmem:[%s8 + $0x18] sm:$0xff]
    %s988 = scalar_lea.vmem %s8, 32
    %v989 = vld [vmem:[%s988] sm:$0xff]
    %v990 = vld [vmem:[%s988 + $0x8] sm:$0xff]
    %v991 = vld [vmem:[%s988 + $0x10] sm:$0xff]
    %v992 = vld [vmem:[%s988 + $0x18] sm:$0xff]
    %vm993 = vcmask 261120
    %v995 = vsel %vm993, %v981, 0
    %997 = vmatprep.subr.mxu0 0.0
    %998 = vmatpush1.msra.mxu0 %v989
    %999 = vmatprep.subr.mxu0 0.0
    %1000 = vmatpush1.msra.mxu0 %v990
    %1001 = vmatprep.subr.mxu0 0.0
    %1002 = vmatpush1.msra.mxu0 %v991
    %1003 = vmatprep.subr.mxu0 0.0
    %1004 = vmatpush1.msra.mxu0 %v992
    %1005 = vmatprep.subr.mxu0 0.0
    %1006 = vmatpush1.msra.mxu0 0.0
    %1007 = vmatprep.subr.mxu0 0.0
    %1008 = vmatpush1.msra.mxu0 0.0
    %1009 = vmatprep.subr.mxu0 0.0
    %1010 = vmatpush1.msra.mxu0 0.0
    %1011 = vmatprep.subr.mxu0 0.0
    %1012 = vmatpush1.msra.mxu0 0.0
    %1013 = vmatprep.subr.mxu0 0.0
    %1014 = vmatpush1.msra.mxu0 0.0
    %1015 = vmatprep.subr.mxu0 0.0
    %1016 = vmatpush1.msra.mxu0 0.0
    %1017 = vmatprep.subr.mxu0 0.0
    %1018 = vmatpush1.msra.mxu0 0.0
    %1019 = vmatprep.subr.mxu0 0.0
    %1020 = vmatpush1.msra.mxu0 0.0
    %1021 = vmatprep.subr.mxu0 0.0
    %1022 = vmatpush1.msra.mxu0 0.0
    %1023 = vmatprep.subr.mxu0 0.0
    %1024 = vmatpush1.msra.mxu0 0.0
    %1025 = vmatprep.subr.mxu0 0.0
    %1026 = vmatpush1.msra.mxu0 0.0
    %1027 = vmatprep.subr.mxu0 0.0
    %1028 = vmatpush1.msra.mxu0 0.0
    %1029 = vmatprep.subr.mxu0 0.0
    %1030 = vmatpush1.msra.mxu0 0.0
    %1031 = vmatprep.subr.mxu0 0.0
    %1032 = vmatpush1.msra.mxu0 0.0
    %1033 = vmatprep.subr.mxu0 0.0
    %1034 = vmatpush1.msra.mxu0 0.0
    %1035 = vmatprep.subr.mxu0 0.0
    %1036 = vmatpush1.msra.mxu0 0.0
    %1037 = vmatprep.subr.mxu0 0.0
    %1038 = vmatpush1.msra.mxu0 0.0
    %1039 = vmatprep.subr.mxu0 0.0
    %1040 = vmatpush1.msra.mxu0 0.0
    %1041 = vmatprep.subr.mxu0 0.0
    %1042 = vmatpush1.msra.mxu0 0.0
    %1043 = vmatprep.subr.mxu0 0.0
    %1044 = vmatpush1.msra.mxu0 0.0
    %1045 = vmatprep.subr.mxu0 0.0
    %1046 = vmatpush1.msra.mxu0 0.0
    %1047 = vmatprep.subr.mxu0 0.0
    %1048 = vmatpush1.msra.mxu0 0.0
    %1049 = vmatprep.subr.mxu0 0.0
    %1050 = vmatpush1.msra.mxu0 0.0
    %1051 = vmatprep.subr.mxu0 0.0
    %1052 = vmatpush1.msra.mxu0 0.0
    %1053 = vmatprep.subr.mxu0 0.0
    %1054 = vmatpush1.msra.mxu0 0.0
    %1055 = vmatprep.subr.mxu0 0.0
    %1056 = vmatpush1.msra.mxu0 0.0
    %1057 = vmatprep.subr.mxu0 0.0
    %1058 = vmatpush1.msra.mxu0 0.0
    %1059 = vmatprep.subr.mxu0 0.0
    %1060 = vmatpush1.msra.mxu0 0.0
    %1061 = vmatprep.mubr.f32.mxu0 0.0
    %1062 = vmatmul.mubr.f32.gmra.mrb[0].mxu0 %v995
    %v1063 = vpop.f32.mrb[0].mxu0
    %v1064 = vadd.f32 0.0, %v1063
    %v1065 = vpop.f32.mrb[0].mxu0
    %1066 = vdwg.mxu0
    %v1068 = vsel %vm993, %v976, 0
    %1070 = vmatprep.subr.mxu0 0.0
    %1071 = vmatpush1.msra.mxu0 %v984
    %1072 = vmatprep.subr.mxu0 0.0
    %1073 = vmatpush1.msra.mxu0 %v985
    %1074 = vmatprep.subr.mxu0 0.0
    %1075 = vmatpush1.msra.mxu0 %v986
    %1076 = vmatprep.subr.mxu0 0.0
    %1077 = vmatpush1.msra.mxu0 %v987
    %1078 = vmatprep.subr.mxu0 0.0
    %1079 = vmatpush1.msra.mxu0 0.0
    %1080 = vmatprep.subr.mxu0 0.0
    %1081 = vmatpush1.msra.mxu0 0.0
    %1082 = vmatprep.subr.mxu0 0.0
    %1083 = vmatpush1.msra.mxu0 0.0
    %1084 = vmatprep.subr.mxu0 0.0
    %1085 = vmatpush1.msra.mxu0 0.0
    %1086 = vmatprep.subr.mxu0 0.0
    %1087 = vmatpush1.msra.mxu0 0.0
    %1088 = vmatprep.subr.mxu0 0.0
    %1089 = vmatpush1.msra.mxu0 0.0
    %1090 = vmatprep.subr.mxu0 0.0
    %1091 = vmatpush1.msra.mxu0 0.0
    %1092 = vmatprep.subr.mxu0 0.0
    %1093 = vmatpush1.msra.mxu0 0.0
    %1094 = vmatprep.subr.mxu0 0.0
    %1095 = vmatpush1.msra.mxu0 0.0
    %1096 = vmatprep.subr.mxu0 0.0
    %1097 = vmatpush1.msra.mxu0 0.0
    %1098 = vmatprep.subr.mxu0 0.0
    %1099 = vmatpush1.msra.mxu0 0.0
    %1100 = vmatprep.subr.mxu0 0.0
    %1101 = vmatpush1.msra.mxu0 0.0
    %1102 = vmatprep.subr.mxu0 0.0
    %1103 = vmatpush1.msra.mxu0 0.0
    %1104 = vmatprep.subr.mxu0 0.0
    %1105 = vmatpush1.msra.mxu0 0.0
    %1106 = vmatprep.subr.mxu0 0.0
    %1107 = vmatpush1.msra.mxu0 0.0
    %1108 = vmatprep.subr.mxu0 0.0
    %1109 = vmatpush1.msra.mxu0 0.0
    %1110 = vmatprep.subr.mxu0 0.0
    %1111 = vmatpush1.msra.mxu0 0.0
    %1112 = vmatprep.subr.mxu0 0.0
    %1113 = vmatpush1.msra.mxu0 0.0
    %1114 = vmatprep.subr.mxu0 0.0
    %1115 = vmatpush1.msra.mxu0 0.0
    %1116 = vmatprep.subr.mxu0 0.0
    %1117 = vmatpush1.msra.mxu0 0.0
    %1118 = vmatprep.subr.mxu0 0.0
    %1119 = vmatpush1.msra.mxu0 0.0
    %1120 = vmatprep.subr.mxu0 0.0
    %1121 = vmatpush1.msra.mxu0 0.0
    %1122 = vmatprep.subr.mxu0 0.0
    %1123 = vmatpush1.msra.mxu0 0.0
    %1124 = vmatprep.subr.mxu0 0.0
    %1125 = vmatpush1.msra.mxu0 0.0
    %1126 = vmatprep.subr.mxu0 0.0
    %1127 = vmatpush1.msra.mxu0 0.0
    %1128 = vmatprep.subr.mxu0 0.0
    %1129 = vmatpush1.msra.mxu0 0.0
    %1130 = vmatprep.subr.mxu0 0.0
    %1131 = vmatpush1.msra.mxu0 0.0
    %1132 = vmatprep.subr.mxu0 0.0
    %1133 = vmatpush1.msra.mxu0 0.0
    %1134 = vmatprep.mubr.f32.mxu0 0.0
    %1135 = vmatmul.mubr.f32.gmra.mrb[0].mxu0 %v1068
    %v1136 = vpop.f32.mrb[0].mxu0
    %v1137 = vadd.f32 %v1064, %v1136
    %v1138 = vpop.f32.mrb[0].mxu0
    %1139 = vdwg.mxu0
    %v1140 = vld [vmem:[%s9] sm:$0x1]
    %v1142 = vlaneseq
    %v1143 = vshrl.u32 %v1142, 7
    %v1144 = vsub.s32 0, %v1143
    %v1145 = vrot.slane %v1140, %v1144
    %v1147 = vadd.f32 %v1137, %v1145
    %vm1148 = vcmp.ge.f32.partialorder %v1147, 0.0
    %v1149 = vmul.f32 %v1147, 0.01
    %v1150 = vsel %vm1148, %v1147, %v1149
    %vm1151 = vcmask 60416
    %1152 = vst.msk [vmem:[#allocation2] sm:$0xf] %vm1151, %v1150
    %s1153 = scalar_lea.vmem %s0, 48
    %v1154 = vld [vmem:[%s1153] sm:$0xff]
    %v1155 = vld [vmem:[%s1153 + $0x8] sm:$0xff]
    %v1156 = vld [vmem:[%s1153 + $0x10] sm:$0xff]
    %v1157 = vld [vmem:[%s1153 + $0x18] sm:$0xff]
    %v1158 = vld [vmem:[%s1153 + $0x20] sm:$0xff]
    %v1159 = vld [vmem:[%s1153 + $0x28] sm:$0x1]
    %v1160 = vld [vmem:[%s1] sm:$0xff]
    %v1161 = vld [vmem:[%s1 + $0x8] sm:$0xff]
    %v1162 = vld [vmem:[%s1 + $0x10] sm:$0xff]
    %v1163 = vld [vmem:[%s1 + $0x18] sm:$0xff]
    %v1164 = vld [vmem:[%s1 + $0x20] sm:$0xff]
    %v1165 = vld [vmem:[%s1 + $0x28] sm:$0xff]
    %v1166 = vld [vmem:[%s1 + $0x30] sm:$0xff]
    %v1167 = vld [vmem:[%s1 + $0x38] sm:$0xff]
    %v1168 = vld [vmem:[%s1 + $0x40] sm:$0xff]
    %v1170 = vsel %vm51, %v1160, 0
    %v1173 = vsel %vm51, %v1161, 0
    %v1176 = vsel %vm51, %v1162, 0
    %v1179 = vsel %vm51, %v1163, 0
    %v1182 = vsel %vm51, %v1164, 0
    %v1185 = vsel %vm51, %v1165, 0
    %v1188 = vsel %vm51, %v1166, 0
    %v1191 = vsel %vm51, %v1167, 0
    %v1194 = vsel %vm51, %v1168, 0
    %v1197 = vsel %vm79, %v1159, 0
    %1199 = vmatprep.subr.mxu0 0.0
    %1200 = vmatpush1.msra.mxu0 %v1154
    %1201 = vmatprep.subr.mxu0 0.0
    %1202 = vmatpush1.msra.mxu0 %v1155
    %1203 = vmatprep.subr.mxu0 0.0
    %1204 = vmatpush1.msra.mxu0 %v1156
    %1205 = vmatprep.subr.mxu0 0.0
    %1206 = vmatpush1.msra.mxu0 %v1157
    %1207 = vmatprep.subr.mxu0 0.0
    %1208 = vmatpush1.msra.mxu0 %v1158
    %1209 = vmatprep.subr.mxu0 0.0
    %1210 = vmatpush1.msra.mxu0 %v1197
    %1211 = vmatprep.subr.mxu0 0.0
    %1212 = vmatpush1.msra.mxu0 0.0
    %1213 = vmatprep.subr.mxu0 0.0
    %1214 = vmatpush1.msra.mxu0 0.0
    %1215 = vmatprep.subr.mxu0 0.0
    %1216 = vmatpush1.msra.mxu0 0.0
    %1217 = vmatprep.subr.mxu0 0.0
    %1218 = vmatpush1.msra.mxu0 0.0
    %1219 = vmatprep.subr.mxu0 0.0
    %1220 = vmatpush1.msra.mxu0 0.0
    %1221 = vmatprep.subr.mxu0 0.0
    %1222 = vmatpush1.msra.mxu0 0.0
    %1223 = vmatprep.subr.mxu0 0.0
    %1224 = vmatpush1.msra.mxu0 0.0
    %1225 = vmatprep.subr.mxu0 0.0
    %1226 = vmatpush1.msra.mxu0 0.0
    %1227 = vmatprep.subr.mxu0 0.0
    %1228 = vmatpush1.msra.mxu0 0.0
    %1229 = vmatprep.subr.mxu0 0.0
    %1230 = vmatpush1.msra.mxu0 0.0
    %1231 = vmatprep.subr.mxu0 0.0
    %1232 = vmatpush1.msra.mxu0 0.0
    %1233 = vmatprep.subr.mxu0 0.0
    %1234 = vmatpush1.msra.mxu0 0.0
    %1235 = vmatprep.subr.mxu0 0.0
    %1236 = vmatpush1.msra.mxu0 0.0
    %1237 = vmatprep.subr.mxu0 0.0
    %1238 = vmatpush1.msra.mxu0 0.0
    %1239 = vmatprep.subr.mxu0 0.0
    %1240 = vmatpush1.msra.mxu0 0.0
    %1241 = vmatprep.subr.mxu0 0.0
    %1242 = vmatpush1.msra.mxu0 0.0
    %1243 = vmatprep.subr.mxu0 0.0
    %1244 = vmatpush1.msra.mxu0 0.0
    %1245 = vmatprep.subr.mxu0 0.0
    %1246 = vmatpush1.msra.mxu0 0.0
    %1247 = vmatprep.subr.mxu0 0.0
    %1248 = vmatpush1.msra.mxu0 0.0
    %1249 = vmatprep.subr.mxu0 0.0
    %1250 = vmatpush1.msra.mxu0 0.0
    %1251 = vmatprep.subr.mxu0 0.0
    %1252 = vmatpush1.msra.mxu0 0.0
    %1253 = vmatprep.subr.mxu0 0.0
    %1254 = vmatpush1.msra.mxu0 0.0
    %1255 = vmatprep.subr.mxu0 0.0
    %1256 = vmatpush1.msra.mxu0 0.0
    %1257 = vmatprep.subr.mxu0 0.0
    %1258 = vmatpush1.msra.mxu0 0.0
    %1259 = vmatprep.subr.mxu0 0.0
    %1260 = vmatpush1.msra.mxu0 0.0
    %1261 = vmatprep.subr.mxu0 0.0
    %1262 = vmatpush1.msra.mxu0 0.0
    %1263 = vmatprep.mubr.f32.mxu0 0.0
    %1264 = vmatmul.mubr.f32.gmra.mrb[0].mxu0 %v1170
    %v1265 = vpop.f32.mrb[0].mxu0
    %v1266 = vadd.f32 0.0, %v1265
    %v1267 = vpop.f32.mrb[0].mxu0
    %1268 = vmatprep.mubr.f32.mxu0 0.0
    %1269 = vmatmul.mubr.f32.gmra.mrb[0].mxu0 %v1173
    %v1270 = vpop.f32.mrb[0].mxu0
    %v1271 = vadd.f32 0.0, %v1270
    %v1272 = vpop.f32.mrb[0].mxu0
    %1273 = vmatprep.mubr.f32.mxu0 0.0
    %1274 = vmatmul.mubr.f32.gmra.mrb[0].mxu0 %v1176
    %v1275 = vpop.f32.mrb[0].mxu0
    %v1276 = vadd.f32 0.0, %v1275
    %v1277 = vpop.f32.mrb[0].mxu0
    %1278 = vmatprep.mubr.f32.mxu0 0.0
    %1279 = vmatmul.mubr.f32.gmra.mrb[0].mxu0 %v1179
    %v1280 = vpop.f32.mrb[0].mxu0
    %v1281 = vadd.f32 0.0, %v1280
    %v1282 = vpop.f32.mrb[0].mxu0
    %1283 = vmatprep.mubr.f32.mxu0 0.0
    %1284 = vmatmul.mubr.f32.gmra.mrb[0].mxu0 %v1182
    %v1285 = vpop.f32.mrb[0].mxu0
    %v1286 = vadd.f32 0.0, %v1285
    %v1287 = vpop.f32.mrb[0].mxu0
    %1288 = vmatprep.mubr.f32.mxu0 0.0
    %1289 = vmatmul.mubr.f32.gmra.mrb[0].mxu0 %v1185
    %v1290 = vpop.f32.mrb[0].mxu0
    %v1291 = vadd.f32 0.0, %v1290
    %v1292 = vpop.f32.mrb[0].mxu0
    %1293 = vmatprep.mubr.f32.mxu0 0.0
    %1294 = vmatmul.mubr.f32.gmra.mrb[0].mxu0 %v1188
    %v1295 = vpop.f32.mrb[0].mxu0
    %v1296 = vadd.f32 0.0, %v1295
    %v1297 = vpop.f32.mrb[0].mxu0
    %1298 = vmatprep.mubr.f32.mxu0 0.0
    %1299 = vmatmul.mubr.f32.gmra.mrb[0].mxu0 %v1191
    %v1300 = vpop.f32.mrb[0].mxu0
    %v1301 = vadd.f32 0.0, %v1300
    %v1302 = vpop.f32.mrb[0].mxu0
    %1303 = vmatprep.mubr.f32.mxu0 0.0
    %1304 = vmatmul.mubr.f32.gmra.mrb[0].mxu0 %v1194
    %v1305 = vpop.f32.mrb[0].mxu0
    %v1306 = vadd.f32 0.0, %v1305
    %v1307 = vpop.f32.mrb[0].mxu0
    %1308 = vdwg.mxu0
    %v1309 = vld [vmem:[%s2] sm:$0xff]
    %v1310 = vld [vmem:[%s2 + $0x8] sm:$0xff]
    %v1311 = vld [vmem:[%s2 + $0x10] sm:$0xff]
    %v1312 = vld [vmem:[%s2 + $0x18] sm:$0xff]
    %v1313 = vld [vmem:[%s2 + $0x20] sm:$0xff]
    %v1314 = vld [vmem:[%s2 + $0x28] sm:$0xff]
    %v1315 = vld [vmem:[%s2 + $0x30] sm:$0xff]
    %v1316 = vld [vmem:[%s2 + $0x38] sm:$0xff]
    %v1317 = vld [vmem:[%s2 + $0x40] sm:$0xff]
    %v1318 = vld [vmem:[%s2 + $0x48] sm:$0xff]
    %v1319 = vld [vmem:[%s2 + $0x50] sm:$0xff]
    %v1320 = vld [vmem:[%s2 + $0x58] sm:$0xff]
    %v1321 = vld [vmem:[%s2 + $0x60] sm:$0xff]
    %v1322 = vld [vmem:[%s2 + $0x68] sm:$0xff]
    %v1323 = vld [vmem:[%s2 + $0x70] sm:$0xff]
    %v1324 = vld [vmem:[%s2 + $0x78] sm:$0x7]
    %v1325 = vld [vmem:[%s209] sm:$0xff]
    %v1326 = vld [vmem:[%s209 + $0x8] sm:$0xff]
    %v1327 = vld [vmem:[%s209 + $0x10] sm:$0xff]
    %v1328 = vld [vmem:[%s209 + $0x18] sm:$0xff]
    %v1329 = vld [vmem:[%s209 + $0x20] sm:$0xff]
    %v1330 = vld [vmem:[%s209 + $0x28] sm:$0xff]
    %v1331 = vld [vmem:[%s209 + $0x30] sm:$0xff]
    %v1332 = vld [vmem:[%s209 + $0x38] sm:$0xff]
    %v1333 = vld [vmem:[%s209 + $0x40] sm:$0xff]
    %v1334 = vld [vmem:[%s209 + $0x48] sm:$0xff]
    %v1335 = vld [vmem:[%s209 + $0x50] sm:$0xff]
    %v1336 = vld [vmem:[%s209 + $0x58] sm:$0xff]
    %v1337 = vld [vmem:[%s209 + $0x60] sm:$0xff]
    %v1338 = vld [vmem:[%s209 + $0x68] sm:$0xff]
    %v1339 = vld [vmem:[%s209 + $0x70] sm:$0xff]
    %v1340 = vld [vmem:[%s209 + $0x78] sm:$0x7]
    %v1342 = vsel %vm226, %v1281, 0
    %v1345 = vsel %vm226, %v1286, 0
    %v1348 = vsel %vm226, %v1291, 0
    %v1351 = vsel %vm236, %v1340, 0
    %1353 = vmatprep.subr.mxu0 0.0
    %1354 = vmatpush1.msra.mxu0 %v1325
    %1355 = vmatprep.subr.mxu0 0.0
    %1356 = vmatpush1.msra.mxu0 %v1326
    %1357 = vmatprep.subr.mxu0 0.0
    %1358 = vmatpush1.msra.mxu0 %v1327
    %1359 = vmatprep.subr.mxu0 0.0
    %1360 = vmatpush1.msra.mxu0 %v1328
    %1361 = vmatprep.subr.mxu0 0.0
    %1362 = vmatpush1.msra.mxu0 %v1329
    %1363 = vmatprep.subr.mxu0 0.0
    %1364 = vmatpush1.msra.mxu0 %v1330
    %1365 = vmatprep.subr.mxu0 0.0
    %1366 = vmatpush1.msra.mxu0 %v1331
    %1367 = vmatprep.subr.mxu0 0.0
    %1368 = vmatpush1.msra.mxu0 %v1332
    %1369 = vmatprep.subr.mxu0 0.0
    %1370 = vmatpush1.msra.mxu0 %v1333
    %1371 = vmatprep.subr.mxu0 0.0
    %1372 = vmatpush1.msra.mxu0 %v1334
    %1373 = vmatprep.subr.mxu0 0.0
    %1374 = vmatpush1.msra.mxu0 %v1335
    %1375 = vmatprep.subr.mxu0 0.0
    %1376 = vmatpush1.msra.mxu0 %v1336
    %1377 = vmatprep.subr.mxu0 0.0
    %1378 = vmatpush1.msra.mxu0 %v1337
    %1379 = vmatprep.subr.mxu0 0.0
    %1380 = vmatpush1.msra.mxu0 %v1338
    %1381 = vmatprep.subr.mxu0 0.0
    %1382 = vmatpush1.msra.mxu0 %v1339
    %1383 = vmatprep.subr.mxu0 0.0
    %1384 = vmatpush1.msra.mxu0 %v1351
    %1385 = vmatprep.subr.mxu0 0.0
    %1386 = vmatpush1.msra.mxu0 0.0
    %1387 = vmatprep.subr.mxu0 0.0
    %1388 = vmatpush1.msra.mxu0 0.0
    %1389 = vmatprep.subr.mxu0 0.0
    %1390 = vmatpush1.msra.mxu0 0.0
    %1391 = vmatprep.subr.mxu0 0.0
    %1392 = vmatpush1.msra.mxu0 0.0
    %1393 = vmatprep.subr.mxu0 0.0
    %1394 = vmatpush1.msra.mxu0 0.0
    %1395 = vmatprep.subr.mxu0 0.0
    %1396 = vmatpush1.msra.mxu0 0.0
    %1397 = vmatprep.subr.mxu0 0.0
    %1398 = vmatpush1.msra.mxu0 0.0
    %1399 = vmatprep.subr.mxu0 0.0
    %1400 = vmatpush1.msra.mxu0 0.0
    %1401 = vmatprep.subr.mxu0 0.0
    %1402 = vmatpush1.msra.mxu0 0.0
    %1403 = vmatprep.subr.mxu0 0.0
    %1404 = vmatpush1.msra.mxu0 0.0
    %1405 = vmatprep.subr.mxu0 0.0
    %1406 = vmatpush1.msra.mxu0 0.0
    %1407 = vmatprep.subr.mxu0 0.0
    %1408 = vmatpush1.msra.mxu0 0.0
    %1409 = vmatprep.subr.mxu0 0.0
    %1410 = vmatpush1.msra.mxu0 0.0
    %1411 = vmatprep.subr.mxu0 0.0
    %1412 = vmatpush1.msra.mxu0 0.0
    %1413 = vmatprep.subr.mxu0 0.0
    %1414 = vmatpush1.msra.mxu0 0.0
    %1415 = vmatprep.subr.mxu0 0.0
    %1416 = vmatpush1.msra.mxu0 0.0
    %1417 = vmatprep.mubr.f32.mxu0 0.0
    %1418 = vmatmul.mubr.f32.gmra.mrb[0].mxu0 %v1342
    %v1419 = vpop.f32.mrb[0].mxu0
    %v1420 = vadd.f32 0.0, %v1419
    %v1421 = vpop.f32.mrb[0].mxu0
    %1422 = vmatprep.mubr.f32.mxu0 0.0
    %1423 = vmatmul.mubr.f32.gmra.mrb[0].mxu0 %v1345
    %v1424 = vpop.f32.mrb[0].mxu0
    %v1425 = vadd.f32 0.0, %v1424
    %v1426 = vpop.f32.mrb[0].mxu0
    %1427 = vmatprep.mubr.f32.mxu0 0.0
    %1428 = vmatmul.mubr.f32.gmra.mrb[0].mxu0 %v1348
    %v1429 = vpop.f32.mrb[0].mxu0
    %v1430 = vadd.f32 0.0, %v1429
    %v1431 = vpop.f32.mrb[0].mxu0
    %1432 = vdwg.mxu0
    %v1434 = vsel %vm226, %v1266, 0
    %v1437 = vsel %vm226, %v1271, 0
    %v1440 = vsel %vm226, %v1276, 0
    %v1443 = vsel %vm236, %v1324, 0
    %1445 = vmatprep.subr.mxu0 0.0
    %1446 = vmatpush1.msra.mxu0 %v1309
    %1447 = vmatprep.subr.mxu0 0.0
    %1448 = vmatpush1.msra.mxu0 %v1310
    %1449 = vmatprep.subr.mxu0 0.0
    %1450 = vmatpush1.msra.mxu0 %v1311
    %1451 = vmatprep.subr.mxu0 0.0
    %1452 = vmatpush1.msra.mxu0 %v1312
    %1453 = vmatprep.subr.mxu0 0.0
    %1454 = vmatpush1.msra.mxu0 %v1313
    %1455 = vmatprep.subr.mxu0 0.0
    %1456 = vmatpush1.msra.mxu0 %v1314
    %1457 = vmatprep.subr.mxu0 0.0
    %1458 = vmatpush1.msra.mxu0 %v1315
    %1459 = vmatprep.subr.mxu0 0.0
    %1460 = vmatpush1.msra.mxu0 %v1316
    %1461 = vmatprep.subr.mxu0 0.0
    %1462 = vmatpush1.msra.mxu0 %v1317
    %1463 = vmatprep.subr.mxu0 0.0
    %1464 = vmatpush1.msra.mxu0 %v1318
    %1465 = vmatprep.subr.mxu0 0.0
    %1466 = vmatpush1.msra.mxu0 %v1319
    %1467 = vmatprep.subr.mxu0 0.0
    %1468 = vmatpush1.msra.mxu0 %v1320
    %1469 = vmatprep.subr.mxu0 0.0
    %1470 = vmatpush1.msra.mxu0 %v1321
    %1471 = vmatprep.subr.mxu0 0.0
    %1472 = vmatpush1.msra.mxu0 %v1322
    %1473 = vmatprep.subr.mxu0 0.0
    %1474 = vmatpush1.msra.mxu0 %v1323
    %1475 = vmatprep.subr.mxu0 0.0
    %1476 = vmatpush1.msra.mxu0 %v1443
    %1477 = vmatprep.subr.mxu0 0.0
    %1478 = vmatpush1.msra.mxu0 0.0
    %1479 = vmatprep.subr.mxu0 0.0
    %1480 = vmatpush1.msra.mxu0 0.0
    %1481 = vmatprep.subr.mxu0 0.0
    %1482 = vmatpush1.msra.mxu0 0.0
    %1483 = vmatprep.subr.mxu0 0.0
    %1484 = vmatpush1.msra.mxu0 0.0
    %1485 = vmatprep.subr.mxu0 0.0
    %1486 = vmatpush1.msra.mxu0 0.0
    %1487 = vmatprep.subr.mxu0 0.0
    %1488 = vmatpush1.msra.mxu0 0.0
    %1489 = vmatprep.subr.mxu0 0.0
    %1490 = vmatpush1.msra.mxu0 0.0
    %1491 = vmatprep.subr.mxu0 0.0
    %1492 = vmatpush1.msra.mxu0 0.0
    %1493 = vmatprep.subr.mxu0 0.0
    %1494 = vmatpush1.msra.mxu0 0.0
    %1495 = vmatprep.subr.mxu0 0.0
    %1496 = vmatpush1.msra.mxu0 0.0
    %1497 = vmatprep.subr.mxu0 0.0
    %1498 = vmatpush1.msra.mxu0 0.0
    %1499 = vmatprep.subr.mxu0 0.0
    %1500 = vmatpush1.msra.mxu0 0.0
    %1501 = vmatprep.subr.mxu0 0.0
    %1502 = vmatpush1.msra.mxu0 0.0
    %1503 = vmatprep.subr.mxu0 0.0
    %1504 = vmatpush1.msra.mxu0 0.0
    %1505 = vmatprep.subr.mxu0 0.0
    %1506 = vmatpush1.msra.mxu0 0.0
    %1507 = vmatprep.subr.mxu0 0.0
    %1508 = vmatpush1.msra.mxu0 0.0
    %1509 = vmatprep.mubr.f32.mxu0 0.0
    %1510 = vmatmul.mubr.f32.gmra.mrb[0].mxu0 %v1434
    %v1511 = vpop.f32.mrb[0].mxu0
    %v1512 = vadd.f32 %v1420, %v1511
    %v1513 = vpop.f32.mrb[0].mxu0
    %1514 = vmatprep.mubr.f32.mxu0 0.0
    %1515 = vmatmul.mubr.f32.gmra.mrb[0].mxu0 %v1437
    %v1516 = vpop.f32.mrb[0].mxu0
    %v1517 = vadd.f32 %v1425, %v1516
    %v1518 = vpop.f32.mrb[0].mxu0
    %1519 = vmatprep.mubr.f32.mxu0 0.0
    %1520 = vmatmul.mubr.f32.gmra.mrb[0].mxu0 %v1440
    %v1521 = vpop.f32.mrb[0].mxu0
    %v1522 = vadd.f32 %v1430, %v1521
    %v1523 = vpop.f32.mrb[0].mxu0
    %1524 = vdwg.mxu0
    %v1525 = vld [vmem:[%s412] sm:$0xff]
    %v1526 = vld [vmem:[%s412 + $0x8] sm:$0xff]
    %v1527 = vld [vmem:[%s412 + $0x10] sm:$0xff]
    %v1528 = vld [vmem:[%s412 + $0x18] sm:$0xff]
    %v1529 = vld [vmem:[%s412 + $0x20] sm:$0xff]
    %v1530 = vld [vmem:[%s412 + $0x28] sm:$0xff]
    %v1531 = vld [vmem:[%s412 + $0x30] sm:$0xff]
    %v1532 = vld [vmem:[%s412 + $0x38] sm:$0xff]
    %v1533 = vld [vmem:[%s412 + $0x40] sm:$0xff]
    %v1534 = vld [vmem:[%s412 + $0x48] sm:$0xff]
    %v1535 = vld [vmem:[%s412 + $0x50] sm:$0xff]
    %v1536 = vld [vmem:[%s412 + $0x58] sm:$0xff]
    %v1537 = vld [vmem:[%s412 + $0x60] sm:$0xff]
    %v1538 = vld [vmem:[%s412 + $0x68] sm:$0xff]
    %v1539 = vld [vmem:[%s412 + $0x70] sm:$0xff]
    %v1540 = vld [vmem:[%s412 + $0x78] sm:$0x7]
    %v1542 = vsel %vm226, %v1296, 0
    %v1545 = vsel %vm226, %v1301, 0
    %v1548 = vsel %vm226, %v1306, 0
    %v1551 = vsel %vm236, %v1540, 0
    %1553 = vmatprep.subr.mxu0 0.0
    %1554 = vmatpush1.msra.mxu0 %v1525
    %1555 = vmatprep.subr.mxu0 0.0
    %1556 = vmatpush1.msra.mxu0 %v1526
    %1557 = vmatprep.subr.mxu0 0.0
    %1558 = vmatpush1.msra.mxu0 %v1527
    %1559 = vmatprep.subr.mxu0 0.0
    %1560 = vmatpush1.msra.mxu0 %v1528
    %1561 = vmatprep.subr.mxu0 0.0
    %1562 = vmatpush1.msra.mxu0 %v1529
    %1563 = vmatprep.subr.mxu0 0.0
    %1564 = vmatpush1.msra.mxu0 %v1530
    %1565 = vmatprep.subr.mxu0 0.0
    %1566 = vmatpush1.msra.mxu0 %v1531
    %1567 = vmatprep.subr.mxu0 0.0
    %1568 = vmatpush1.msra.mxu0 %v1532
    %1569 = vmatprep.subr.mxu0 0.0
    %1570 = vmatpush1.msra.mxu0 %v1533
    %1571 = vmatprep.subr.mxu0 0.0
    %1572 = vmatpush1.msra.mxu0 %v1534
    %1573 = vmatprep.subr.mxu0 0.0
    %1574 = vmatpush1.msra.mxu0 %v1535
    %1575 = vmatprep.subr.mxu0 0.0
    %1576 = vmatpush1.msra.mxu0 %v1536
    %1577 = vmatprep.subr.mxu0 0.0
    %1578 = vmatpush1.msra.mxu0 %v1537
    %1579 = vmatprep.subr.mxu0 0.0
    %1580 = vmatpush1.msra.mxu0 %v1538
    %1581 = vmatprep.subr.mxu0 0.0
    %1582 = vmatpush1.msra.mxu0 %v1539
    %1583 = vmatprep.subr.mxu0 0.0
    %1584 = vmatpush1.msra.mxu0 %v1551
    %1585 = vmatprep.subr.mxu0 0.0
    %1586 = vmatpush1.msra.mxu0 0.0
    %1587 = vmatprep.subr.mxu0 0.0
    %1588 = vmatpush1.msra.mxu0 0.0
    %1589 = vmatprep.subr.mxu0 0.0
    %1590 = vmatpush1.msra.mxu0 0.0
    %1591 = vmatprep.subr.mxu0 0.0
    %1592 = vmatpush1.msra.mxu0 0.0
    %1593 = vmatprep.subr.mxu0 0.0
    %1594 = vmatpush1.msra.mxu0 0.0
    %1595 = vmatprep.subr.mxu0 0.0
    %1596 = vmatpush1.msra.mxu0 0.0
    %1597 = vmatprep.subr.mxu0 0.0
    %1598 = vmatpush1.msra.mxu0 0.0
    %1599 = vmatprep.subr.mxu0 0.0
    %1600 = vmatpush1.msra.mxu0 0.0
    %1601 = vmatprep.subr.mxu0 0.0
    %1602 = vmatpush1.msra.mxu0 0.0
    %1603 = vmatprep.subr.mxu0 0.0
    %1604 = vmatpush1.msra.mxu0 0.0
    %1605 = vmatprep.subr.mxu0 0.0
    %1606 = vmatpush1.msra.mxu0 0.0
    %1607 = vmatprep.subr.mxu0 0.0
    %1608 = vmatpush1.msra.mxu0 0.0
    %1609 = vmatprep.subr.mxu0 0.0
    %1610 = vmatpush1.msra.mxu0 0.0
    %1611 = vmatprep.subr.mxu0 0.0
    %1612 = vmatpush1.msra.mxu0 0.0
    %1613 = vmatprep.subr.mxu0 0.0
    %1614 = vmatpush1.msra.mxu0 0.0
    %1615 = vmatprep.subr.mxu0 0.0
    %1616 = vmatpush1.msra.mxu0 0.0
    %1617 = vmatprep.mubr.f32.mxu0 0.0
    %1618 = vmatmul.mubr.f32.gmra.mrb[0].mxu0 %v1542
    %v1619 = vpop.f32.mrb[0].mxu0
    %v1620 = vadd.f32 0.0, %v1619
    %v1621 = vpop.f32.mrb[0].mxu0
    %1622 = vmatprep.mubr.f32.mxu0 0.0
    %1623 = vmatmul.mubr.f32.gmra.mrb[0].mxu0 %v1545
    %v1624 = vpop.f32.mrb[0].mxu0
    %v1625 = vadd.f32 0.0, %v1624
    %v1626 = vpop.f32.mrb[0].mxu0
    %1627 = vmatprep.mubr.f32.mxu0 0.0
    %1628 = vmatmul.mubr.f32.gmra.mrb[0].mxu0 %v1548
    %v1629 = vpop.f32.mrb[0].mxu0
    %v1630 = vadd.f32 0.0, %v1629
    %v1631 = vpop.f32.mrb[0].mxu0
    %1632 = vdwg.mxu0
    %v1633 = vadd.f32 %v1512, %v1620
    %v1634 = vadd.f32 %v1517, %v1625
    %v1635 = vadd.f32 %v1522, %v1630
    %v1636 = vld [vmem:[%s3] sm:$0x1]
    %v1638 = vlaneseq
    %v1639 = vshrl.u32 %v1638, 7
    %v1640 = vsub.s32 0, %v1639
    %v1641 = vrot.slane %v1636, %v1640
    %v1643 = vadd.f32 %v1633, %v1641
    %v1644 = vadd.f32 %v1634, %v1641
    %v1645 = vadd.f32 %v1635, %v1641
    %vm1646 = vcmp.ge.f32.partialorder %v1643, 0.0
    %vm1647 = vcmp.ge.f32.partialorder %v1644, 0.0
    %vm1648 = vcmp.ge.f32.partialorder %v1645, 0.0
    %v1649 = vmul.f32 %v1643, 0.01
    %v1650 = vmul.f32 %v1644, 0.01
    %v1651 = vmul.f32 %v1645, 0.01
    %v1652 = vsel %vm1646, %v1643, %v1649
    %v1653 = vsel %vm1647, %v1644, %v1650
    %v1654 = vsel %vm1648, %v1645, %v1651
    %v1655 = vld [vmem:[%s4] sm:$0xff]
    %v1656 = vld [vmem:[%s4 + $0x8] sm:$0xff]
    %v1657 = vld [vmem:[%s4 + $0x10] sm:$0xff]
    %v1659 = vsel %vm546, %v1655, 0
    %v1662 = vsel %vm546, %v1656, 0
    %v1665 = vsel %vm546, %v1657, 0
    %1667 = vmatprep.subr.mxu0 0.0
    %1668 = vmatpush1.msra.mxu0 %v1652
    %1669 = vmatprep.subr.mxu0 0.0
    %1670 = vmatpush1.msra.mxu0 %v1653
    %1671 = vmatprep.subr.mxu0 0.0
    %1672 = vmatpush1.msra.mxu0 %v1654
    %1673 = vmatprep.subr.mxu0 0.0
    %1674 = vmatpush1.msra.mxu0 0.0
    %1675 = vmatprep.subr.mxu0 0.0
    %1676 = vmatpush1.msra.mxu0 0.0
    %1677 = vmatprep.subr.mxu0 0.0
    %1678 = vmatpush1.msra.mxu0 0.0
    %1679 = vmatprep.subr.mxu0 0.0
    %1680 = vmatpush1.msra.mxu0 0.0
    %1681 = vmatprep.subr.mxu0 0.0
    %1682 = vmatpush1.msra.mxu0 0.0
    %1683 = vmatprep.subr.mxu0 0.0
    %1684 = vmatpush1.msra.mxu0 0.0
    %1685 = vmatprep.subr.mxu0 0.0
    %1686 = vmatpush1.msra.mxu0 0.0
    %1687 = vmatprep.subr.mxu0 0.0
    %1688 = vmatpush1.msra.mxu0 0.0
    %1689 = vmatprep.subr.mxu0 0.0
    %1690 = vmatpush1.msra.mxu0 0.0
    %1691 = vmatprep.subr.mxu0 0.0
    %1692 = vmatpush1.msra.mxu0 0.0
    %1693 = vmatprep.subr.mxu0 0.0
    %1694 = vmatpush1.msra.mxu0 0.0
    %1695 = vmatprep.subr.mxu0 0.0
    %1696 = vmatpush1.msra.mxu0 0.0
    %1697 = vmatprep.subr.mxu0 0.0
    %1698 = vmatpush1.msra.mxu0 0.0
    %1699 = vmatprep.subr.mxu0 0.0
    %1700 = vmatpush1.msra.mxu0 0.0
    %1701 = vmatprep.subr.mxu0 0.0
    %1702 = vmatpush1.msra.mxu0 0.0
    %1703 = vmatprep.subr.mxu0 0.0
    %1704 = vmatpush1.msra.mxu0 0.0
    %1705 = vmatprep.subr.mxu0 0.0
    %1706 = vmatpush1.msra.mxu0 0.0
    %1707 = vmatprep.subr.mxu0 0.0
    %1708 = vmatpush1.msra.mxu0 0.0
    %1709 = vmatprep.subr.mxu0 0.0
    %1710 = vmatpush1.msra.mxu0 0.0
    %1711 = vmatprep.subr.mxu0 0.0
    %1712 = vmatpush1.msra.mxu0 0.0
    %1713 = vmatprep.subr.mxu0 0.0
    %1714 = vmatpush1.msra.mxu0 0.0
    %1715 = vmatprep.subr.mxu0 0.0
    %1716 = vmatpush1.msra.mxu0 0.0
    %1717 = vmatprep.subr.mxu0 0.0
    %1718 = vmatpush1.msra.mxu0 0.0
    %1719 = vmatprep.subr.mxu0 0.0
    %1720 = vmatpush1.msra.mxu0 0.0
    %1721 = vmatprep.subr.mxu0 0.0
    %1722 = vmatpush1.msra.mxu0 0.0
    %1723 = vmatprep.subr.mxu0 0.0
    %1724 = vmatpush1.msra.mxu0 0.0
    %1725 = vmatprep.subr.mxu0 0.0
    %1726 = vmatpush1.msra.mxu0 0.0
    %1727 = vmatprep.subr.mxu0 0.0
    %1728 = vmatpush1.msra.mxu0 0.0
    %1729 = vmatprep.subr.mxu0 0.0
    %1730 = vmatpush1.msra.mxu0 0.0
    %1731 = vmatprep.mubr.f32.mxu0 0.0
    %1732 = vmatmul.mubr.f32.gmra.mrb[0].mxu0 %v1659
    %v1733 = vpop.f32.mrb[0].mxu0
    %v1734 = vadd.f32 0.0, %v1733
    %v1735 = vpop.f32.mrb[0].mxu0
    %1736 = vmatprep.mubr.f32.mxu0 0.0
    %1737 = vmatmul.mubr.f32.gmra.mrb[0].mxu0 %v1662
    %v1738 = vpop.f32.mrb[0].mxu0
    %v1739 = vadd.f32 0.0, %v1738
    %v1740 = vpop.f32.mrb[0].mxu0
    %1741 = vmatprep.mubr.f32.mxu0 0.0
    %1742 = vmatmul.mubr.f32.gmra.mrb[0].mxu0 %v1665
    %v1743 = vpop.f32.mrb[0].mxu0
    %v1744 = vadd.f32 0.0, %v1743
    %v1745 = vpop.f32.mrb[0].mxu0
    %1746 = vdwg.mxu0
    %v1747 = vld [vmem:[%s5] sm:$0xff]
    %v1748 = vld [vmem:[%s5 + $0x8] sm:$0xff]
    %v1749 = vld [vmem:[%s5 + $0x10] sm:$0xff]
    %v1750 = vld [vmem:[%s5 + $0x18] sm:$0xff]
    %v1751 = vld [vmem:[%s5 + $0x20] sm:$0xff]
    %v1752 = vld [vmem:[%s5 + $0x28] sm:$0xff]
    %v1753 = vld [vmem:[%s5 + $0x30] sm:$0xff]
    %v1754 = vld [vmem:[%s5 + $0x38] sm:$0xff]
    %v1755 = vld [vmem:[%s5 + $0x40] sm:$0xff]
    %v1756 = vld [vmem:[%s5 + $0x48] sm:$0xff]
    %v1757 = vld [vmem:[%s646] sm:$0xff]
    %v1758 = vld [vmem:[%s646 + $0x8] sm:$0xff]
    %v1759 = vld [vmem:[%s646 + $0x10] sm:$0xff]
    %v1760 = vld [vmem:[%s646 + $0x18] sm:$0xff]
    %v1761 = vld [vmem:[%s646 + $0x20] sm:$0xff]
    %v1762 = vld [vmem:[%s646 + $0x28] sm:$0xff]
    %v1763 = vld [vmem:[%s646 + $0x30] sm:$0xff]
    %v1764 = vld [vmem:[%s646 + $0x38] sm:$0xff]
    %v1765 = vld [vmem:[%s646 + $0x40] sm:$0xff]
    %v1766 = vld [vmem:[%s646 + $0x48] sm:$0xff]
    %v1768 = vsel %vm657, %v1739, 0
    %1770 = vmatprep.subr.mxu0 0.0
    %1771 = vmatpush1.msra.mxu0 %v1757
    %1772 = vmatprep.subr.mxu0 0.0
    %1773 = vmatpush1.msra.mxu0 %v1758
    %1774 = vmatprep.subr.mxu0 0.0
    %1775 = vmatpush1.msra.mxu0 %v1759
    %1776 = vmatprep.subr.mxu0 0.0
    %1777 = vmatpush1.msra.mxu0 %v1760
    %1778 = vmatprep.subr.mxu0 0.0
    %1779 = vmatpush1.msra.mxu0 %v1761
    %1780 = vmatprep.subr.mxu0 0.0
    %1781 = vmatpush1.msra.mxu0 %v1762
    %1782 = vmatprep.subr.mxu0 0.0
    %1783 = vmatpush1.msra.mxu0 %v1763
    %1784 = vmatprep.subr.mxu0 0.0
    %1785 = vmatpush1.msra.mxu0 %v1764
    %1786 = vmatprep.subr.mxu0 0.0
    %1787 = vmatpush1.msra.mxu0 %v1765
    %1788 = vmatprep.subr.mxu0 0.0
    %1789 = vmatpush1.msra.mxu0 %v1766
    %1790 = vmatprep.subr.mxu0 0.0
    %1791 = vmatpush1.msra.mxu0 0.0
    %1792 = vmatprep.subr.mxu0 0.0
    %1793 = vmatpush1.msra.mxu0 0.0
    %1794 = vmatprep.subr.mxu0 0.0
    %1795 = vmatpush1.msra.mxu0 0.0
    %1796 = vmatprep.subr.mxu0 0.0
    %1797 = vmatpush1.msra.mxu0 0.0
    %1798 = vmatprep.subr.mxu0 0.0
    %1799 = vmatpush1.msra.mxu0 0.0
    %1800 = vmatprep.subr.mxu0 0.0
    %1801 = vmatpush1.msra.mxu0 0.0
    %1802 = vmatprep.subr.mxu0 0.0
    %1803 = vmatpush1.msra.mxu0 0.0
    %1804 = vmatprep.subr.mxu0 0.0
    %1805 = vmatpush1.msra.mxu0 0.0
    %1806 = vmatprep.subr.mxu0 0.0
    %1807 = vmatpush1.msra.mxu0 0.0
    %1808 = vmatprep.subr.mxu0 0.0
    %1809 = vmatpush1.msra.mxu0 0.0
    %1810 = vmatprep.subr.mxu0 0.0
    %1811 = vmatpush1.msra.mxu0 0.0
    %1812 = vmatprep.subr.mxu0 0.0
    %1813 = vmatpush1.msra.mxu0 0.0
    %1814 = vmatprep.subr.mxu0 0.0
    %1815 = vmatpush1.msra.mxu0 0.0
    %1816 = vmatprep.subr.mxu0 0.0
    %1817 = vmatpush1.msra.mxu0 0.0
    %1818 = vmatprep.subr.mxu0 0.0
    %1819 = vmatpush1.msra.mxu0 0.0
    %1820 = vmatprep.subr.mxu0 0.0
    %1821 = vmatpush1.msra.mxu0 0.0
    %1822 = vmatprep.subr.mxu0 0.0
    %1823 = vmatpush1.msra.mxu0 0.0
    %1824 = vmatprep.subr.mxu0 0.0
    %1825 = vmatpush1.msra.mxu0 0.0
    %1826 = vmatprep.subr.mxu0 0.0
    %1827 = vmatpush1.msra.mxu0 0.0
    %1828 = vmatprep.subr.mxu0 0.0
    %1829 = vmatpush1.msra.mxu0 0.0
    %1830 = vmatprep.subr.mxu0 0.0
    %1831 = vmatpush1.msra.mxu0 0.0
    %1832 = vmatprep.subr.mxu0 0.0
    %1833 = vmatpush1.msra.mxu0 0.0
    %1834 = vmatprep.mubr.f32.mxu0 0.0
    %1835 = vmatmul.mubr.f32.gmra.mrb[0].mxu0 %v1768
    %v1836 = vpop.f32.mrb[0].mxu0
    %v1837 = vadd.f32 0.0, %v1836
    %v1838 = vpop.f32.mrb[0].mxu0
    %1839 = vdwg.mxu0
    %v1841 = vsel %vm657, %v1734, 0
    %1843 = vmatprep.subr.mxu0 0.0
    %1844 = vmatpush1.msra.mxu0 %v1747
    %1845 = vmatprep.subr.mxu0 0.0
    %1846 = vmatpush1.msra.mxu0 %v1748
    %1847 = vmatprep.subr.mxu0 0.0
    %1848 = vmatpush1.msra.mxu0 %v1749
    %1849 = vmatprep.subr.mxu0 0.0
    %1850 = vmatpush1.msra.mxu0 %v1750
    %1851 = vmatprep.subr.mxu0 0.0
    %1852 = vmatpush1.msra.mxu0 %v1751
    %1853 = vmatprep.subr.mxu0 0.0
    %1854 = vmatpush1.msra.mxu0 %v1752
    %1855 = vmatprep.subr.mxu0 0.0
    %1856 = vmatpush1.msra.mxu0 %v1753
    %1857 = vmatprep.subr.mxu0 0.0
    %1858 = vmatpush1.msra.mxu0 %v1754
    %1859 = vmatprep.subr.mxu0 0.0
    %1860 = vmatpush1.msra.mxu0 %v1755
    %1861 = vmatprep.subr.mxu0 0.0
    %1862 = vmatpush1.msra.mxu0 %v1756
    %1863 = vmatprep.subr.mxu0 0.0
    %1864 = vmatpush1.msra.mxu0 0.0
    %1865 = vmatprep.subr.mxu0 0.0
    %1866 = vmatpush1.msra.mxu0 0.0
    %1867 = vmatprep.subr.mxu0 0.0
    %1868 = vmatpush1.msra.mxu0 0.0
    %1869 = vmatprep.subr.mxu0 0.0
    %1870 = vmatpush1.msra.mxu0 0.0
    %1871 = vmatprep.subr.mxu0 0.0
    %1872 = vmatpush1.msra.mxu0 0.0
    %1873 = vmatprep.subr.mxu0 0.0
    %1874 = vmatpush1.msra.mxu0 0.0
    %1875 = vmatprep.subr.mxu0 0.0
    %1876 = vmatpush1.msra.mxu0 0.0
    %1877 = vmatprep.subr.mxu0 0.0
    %1878 = vmatpush1.msra.mxu0 0.0
    %1879 = vmatprep.subr.mxu0 0.0
    %1880 = vmatpush1.msra.mxu0 0.0
    %1881 = vmatprep.subr.mxu0 0.0
    %1882 = vmatpush1.msra.mxu0 0.0
    %1883 = vmatprep.subr.mxu0 0.0
    %1884 = vmatpush1.msra.mxu0 0.0
    %1885 = vmatprep.subr.mxu0 0.0
    %1886 = vmatpush1.msra.mxu0 0.0
    %1887 = vmatprep.subr.mxu0 0.0
    %1888 = vmatpush1.msra.mxu0 0.0
    %1889 = vmatprep.subr.mxu0 0.0
    %1890 = vmatpush1.msra.mxu0 0.0
    %1891 = vmatprep.subr.mxu0 0.0
    %1892 = vmatpush1.msra.mxu0 0.0
    %1893 = vmatprep.subr.mxu0 0.0
    %1894 = vmatpush1.msra.mxu0 0.0
    %1895 = vmatprep.subr.mxu0 0.0
    %1896 = vmatpush1.msra.mxu0 0.0
    %1897 = vmatprep.subr.mxu0 0.0
    %1898 = vmatpush1.msra.mxu0 0.0
    %1899 = vmatprep.subr.mxu0 0.0
    %1900 = vmatpush1.msra.mxu0 0.0
    %1901 = vmatprep.subr.mxu0 0.0
    %1902 = vmatpush1.msra.mxu0 0.0
    %1903 = vmatprep.subr.mxu0 0.0
    %1904 = vmatpush1.msra.mxu0 0.0
    %1905 = vmatprep.subr.mxu0 0.0
    %1906 = vmatpush1.msra.mxu0 0.0
    %1907 = vmatprep.mubr.f32.mxu0 0.0
    %1908 = vmatmul.mubr.f32.gmra.mrb[0].mxu0 %v1841
    %v1909 = vpop.f32.mrb[0].mxu0
    %v1910 = vadd.f32 %v1837, %v1909
    %v1911 = vpop.f32.mrb[0].mxu0
    %1912 = vdwg.mxu0
    %v1913 = vld [vmem:[%s804] sm:$0xff]
    %v1914 = vld [vmem:[%s804 + $0x8] sm:$0xff]
    %v1915 = vld [vmem:[%s804 + $0x10] sm:$0xff]
    %v1916 = vld [vmem:[%s804 + $0x18] sm:$0xff]
    %v1917 = vld [vmem:[%s804 + $0x20] sm:$0xff]
    %v1918 = vld [vmem:[%s804 + $0x28] sm:$0xff]
    %v1919 = vld [vmem:[%s804 + $0x30] sm:$0xff]
    %v1920 = vld [vmem:[%s804 + $0x38] sm:$0xff]
    %v1921 = vld [vmem:[%s804 + $0x40] sm:$0xff]
    %v1922 = vld [vmem:[%s804 + $0x48] sm:$0xff]
    %v1924 = vsel %vm657, %v1744, 0
    %1926 = vmatprep.subr.mxu0 0.0
    %1927 = vmatpush1.msra.mxu0 %v1913
    %1928 = vmatprep.subr.mxu0 0.0
    %1929 = vmatpush1.msra.mxu0 %v1914
    %1930 = vmatprep.subr.mxu0 0.0
    %1931 = vmatpush1.msra.mxu0 %v1915
    %1932 = vmatprep.subr.mxu0 0.0
    %1933 = vmatpush1.msra.mxu0 %v1916
    %1934 = vmatprep.subr.mxu0 0.0
    %1935 = vmatpush1.msra.mxu0 %v1917
    %1936 = vmatprep.subr.mxu0 0.0
    %1937 = vmatpush1.msra.mxu0 %v1918
    %1938 = vmatprep.subr.mxu0 0.0
    %1939 = vmatpush1.msra.mxu0 %v1919
    %1940 = vmatprep.subr.mxu0 0.0
    %1941 = vmatpush1.msra.mxu0 %v1920
    %1942 = vmatprep.subr.mxu0 0.0
    %1943 = vmatpush1.msra.mxu0 %v1921
    %1944 = vmatprep.subr.mxu0 0.0
    %1945 = vmatpush1.msra.mxu0 %v1922
    %1946 = vmatprep.subr.mxu0 0.0
    %1947 = vmatpush1.msra.mxu0 0.0
    %1948 = vmatprep.subr.mxu0 0.0
    %1949 = vmatpush1.msra.mxu0 0.0
    %1950 = vmatprep.subr.mxu0 0.0
    %1951 = vmatpush1.msra.mxu0 0.0
    %1952 = vmatprep.subr.mxu0 0.0
    %1953 = vmatpush1.msra.mxu0 0.0
    %1954 = vmatprep.subr.mxu0 0.0
    %1955 = vmatpush1.msra.mxu0 0.0
    %1956 = vmatprep.subr.mxu0 0.0
    %1957 = vmatpush1.msra.mxu0 0.0
    %1958 = vmatprep.subr.mxu0 0.0
    %1959 = vmatpush1.msra.mxu0 0.0
    %1960 = vmatprep.subr.mxu0 0.0
    %1961 = vmatpush1.msra.mxu0 0.0
    %1962 = vmatprep.subr.mxu0 0.0
    %1963 = vmatpush1.msra.mxu0 0.0
    %1964 = vmatprep.subr.mxu0 0.0
    %1965 = vmatpush1.msra.mxu0 0.0
    %1966 = vmatprep.subr.mxu0 0.0
    %1967 = vmatpush1.msra.mxu0 0.0
    %1968 = vmatprep.subr.mxu0 0.0
    %1969 = vmatpush1.msra.mxu0 0.0
    %1970 = vmatprep.subr.mxu0 0.0
    %1971 = vmatpush1.msra.mxu0 0.0
    %1972 = vmatprep.subr.mxu0 0.0
    %1973 = vmatpush1.msra.mxu0 0.0
    %1974 = vmatprep.subr.mxu0 0.0
    %1975 = vmatpush1.msra.mxu0 0.0
    %1976 = vmatprep.subr.mxu0 0.0
    %1977 = vmatpush1.msra.mxu0 0.0
    %1978 = vmatprep.subr.mxu0 0.0
    %1979 = vmatpush1.msra.mxu0 0.0
    %1980 = vmatprep.subr.mxu0 0.0
    %1981 = vmatpush1.msra.mxu0 0.0
    %1982 = vmatprep.subr.mxu0 0.0
    %1983 = vmatpush1.msra.mxu0 0.0
    %1984 = vmatprep.subr.mxu0 0.0
    %1985 = vmatpush1.msra.mxu0 0.0
    %1986 = vmatprep.subr.mxu0 0.0
    %1987 = vmatpush1.msra.mxu0 0.0
    %1988 = vmatprep.subr.mxu0 0.0
    %1989 = vmatpush1.msra.mxu0 0.0
    %1990 = vmatprep.mubr.f32.mxu0 0.0
    %1991 = vmatmul.mubr.f32.gmra.mrb[0].mxu0 %v1924
    %v1992 = vpop.f32.mrb[0].mxu0
    %v1993 = vadd.f32 0.0, %v1992
    %v1994 = vpop.f32.mrb[0].mxu0
    %1995 = vdwg.mxu0
    %v1996 = vadd.f32 %v1910, %v1993
    %v1997 = vld [vmem:[%s6] sm:$0x1]
    %v1999 = vlaneseq
    %v2000 = vshrl.u32 %v1999, 7
    %v2001 = vsub.s32 0, %v2000
    %v2002 = vrot.slane %v1997, %v2001
    %v2004 = vadd.f32 %v1996, %v2002
    %vm2005 = vcmp.ge.f32.partialorder %v2004, 0.0
    %v2006 = vmul.f32 %v2004, 0.01
    %v2007 = vsel %vm2005, %v2004, %v2006
    %v2008 = vld [vmem:[%s7] sm:$0xff]
    %v2009 = vld [vmem:[%s7 + $0x8] sm:$0xff]
    %v2011 = vsel %vm902, %v2008, 0
    %v2014 = vsel %vm902, %v2009, 0
    %2016 = vmatprep.subr.mxu0 0.0
    %2017 = vmatpush1.msra.mxu0 %v2007
    %2018 = vmatprep.subr.mxu0 0.0
    %2019 = vmatpush1.msra.mxu0 0.0
    %2020 = vmatprep.subr.mxu0 0.0
    %2021 = vmatpush1.msra.mxu0 0.0
    %2022 = vmatprep.subr.mxu0 0.0
    %2023 = vmatpush1.msra.mxu0 0.0
    %2024 = vmatprep.subr.mxu0 0.0
    %2025 = vmatpush1.msra.mxu0 0.0
    %2026 = vmatprep.subr.mxu0 0.0
    %2027 = vmatpush1.msra.mxu0 0.0
    %2028 = vmatprep.subr.mxu0 0.0
    %2029 = vmatpush1.msra.mxu0 0.0
    %2030 = vmatprep.subr.mxu0 0.0
    %2031 = vmatpush1.msra.mxu0 0.0
    %2032 = vmatprep.subr.mxu0 0.0
    %2033 = vmatpush1.msra.mxu0 0.0
    %2034 = vmatprep.subr.mxu0 0.0
    %2035 = vmatpush1.msra.mxu0 0.0
    %2036 = vmatprep.subr.mxu0 0.0
    %2037 = vmatpush1.msra.mxu0 0.0
    %2038 = vmatprep.subr.mxu0 0.0
    %2039 = vmatpush1.msra.mxu0 0.0
    %2040 = vmatprep.subr.mxu0 0.0
    %2041 = vmatpush1.msra.mxu0 0.0
    %2042 = vmatprep.subr.mxu0 0.0
    %2043 = vmatpush1.msra.mxu0 0.0
    %2044 = vmatprep.subr.mxu0 0.0
    %2045 = vmatpush1.msra.mxu0 0.0
    %2046 = vmatprep.subr.mxu0 0.0
    %2047 = vmatpush1.msra.mxu0 0.0
    %2048 = vmatprep.subr.mxu0 0.0
    %2049 = vmatpush1.msra.mxu0 0.0
    %2050 = vmatprep.subr.mxu0 0.0
    %2051 = vmatpush1.msra.mxu0 0.0
    %2052 = vmatprep.subr.mxu0 0.0
    %2053 = vmatpush1.msra.mxu0 0.0
    %2054 = vmatprep.subr.mxu0 0.0
    %2055 = vmatpush1.msra.mxu0 0.0
    %2056 = vmatprep.subr.mxu0 0.0
    %2057 = vmatpush1.msra.mxu0 0.0
    %2058 = vmatprep.subr.mxu0 0.0
    %2059 = vmatpush1.msra.mxu0 0.0
    %2060 = vmatprep.subr.mxu0 0.0
    %2061 = vmatpush1.msra.mxu0 0.0
    %2062 = vmatprep.subr.mxu0 0.0
    %2063 = vmatpush1.msra.mxu0 0.0
    %2064 = vmatprep.subr.mxu0 0.0
    %2065 = vmatpush1.msra.mxu0 0.0
    %2066 = vmatprep.subr.mxu0 0.0
    %2067 = vmatpush1.msra.mxu0 0.0
    %2068 = vmatprep.subr.mxu0 0.0
    %2069 = vmatpush1.msra.mxu0 0.0
    %2070 = vmatprep.subr.mxu0 0.0
    %2071 = vmatpush1.msra.mxu0 0.0
    %2072 = vmatprep.subr.mxu0 0.0
    %2073 = vmatpush1.msra.mxu0 0.0
    %2074 = vmatprep.subr.mxu0 0.0
    %2075 = vmatpush1.msra.mxu0 0.0
    %2076 = vmatprep.subr.mxu0 0.0
    %2077 = vmatpush1.msra.mxu0 0.0
    %2078 = vmatprep.subr.mxu0 0.0
    %2079 = vmatpush1.msra.mxu0 0.0
    %2080 = vmatprep.mubr.f32.mxu0 0.0
    %2081 = vmatmul.mubr.f32.gmra.mrb[0].mxu0 %v2011
    %v2082 = vpop.f32.mrb[0].mxu0
    %v2083 = vadd.f32 0.0, %v2082
    %v2084 = vpop.f32.mrb[0].mxu0
    %2085 = vmatprep.mubr.f32.mxu0 0.0
    %2086 = vmatmul.mubr.f32.gmra.mrb[0].mxu0 %v2014
    %v2087 = vpop.f32.mrb[0].mxu0
    %v2088 = vadd.f32 0.0, %v2087
    %v2089 = vpop.f32.mrb[0].mxu0
    %2090 = vdwg.mxu0
    %v2091 = vld [vmem:[%s8] sm:$0xff]
    %v2092 = vld [vmem:[%s8 + $0x8] sm:$0xff]
    %v2093 = vld [vmem:[%s8 + $0x10] sm:$0xff]
    %v2094 = vld [vmem:[%s8 + $0x18] sm:$0xff]
    %v2095 = vld [vmem:[%s988] sm:$0xff]
    %v2096 = vld [vmem:[%s988 + $0x8] sm:$0xff]
    %v2097 = vld [vmem:[%s988 + $0x10] sm:$0xff]
    %v2098 = vld [vmem:[%s988 + $0x18] sm:$0xff]
    %v2100 = vsel %vm993, %v2088, 0
    %2102 = vmatprep.subr.mxu0 0.0
    %2103 = vmatpush1.msra.mxu0 %v2095
    %2104 = vmatprep.subr.mxu0 0.0
    %2105 = vmatpush1.msra.mxu0 %v2096
    %2106 = vmatprep.subr.mxu0 0.0
    %2107 = vmatpush1.msra.mxu0 %v2097
    %2108 = vmatprep.subr.mxu0 0.0
    %2109 = vmatpush1.msra.mxu0 %v2098
    %2110 = vmatprep.subr.mxu0 0.0
    %2111 = vmatpush1.msra.mxu0 0.0
    %2112 = vmatprep.subr.mxu0 0.0
    %2113 = vmatpush1.msra.mxu0 0.0
    %2114 = vmatprep.subr.mxu0 0.0
    %2115 = vmatpush1.msra.mxu0 0.0
    %2116 = vmatprep.subr.mxu0 0.0
    %2117 = vmatpush1.msra.mxu0 0.0
    %2118 = vmatprep.subr.mxu0 0.0
    %2119 = vmatpush1.msra.mxu0 0.0
    %2120 = vmatprep.subr.mxu0 0.0
    %2121 = vmatpush1.msra.mxu0 0.0
    %2122 = vmatprep.subr.mxu0 0.0
    %2123 = vmatpush1.msra.mxu0 0.0
    %2124 = vmatprep.subr.mxu0 0.0
    %2125 = vmatpush1.msra.mxu0 0.0
    %2126 = vmatprep.subr.mxu0 0.0
    %2127 = vmatpush1.msra.mxu0 0.0
    %2128 = vmatprep.subr.mxu0 0.0
    %2129 = vmatpush1.msra.mxu0 0.0
    %2130 = vmatprep.subr.mxu0 0.0
    %2131 = vmatpush1.msra.mxu0 0.0
    %2132 = vmatprep.subr.mxu0 0.0
    %2133 = vmatpush1.msra.mxu0 0.0
    %2134 = vmatprep.subr.mxu0 0.0
    %2135 = vmatpush1.msra.mxu0 0.0
    %2136 = vmatprep.subr.mxu0 0.0
    %2137 = vmatpush1.msra.mxu0 0.0
    %2138 = vmatprep.subr.mxu0 0.0
    %2139 = vmatpush1.msra.mxu0 0.0
    %2140 = vmatprep.subr.mxu0 0.0
    %2141 = vmatpush1.msra.mxu0 0.0
    %2142 = vmatprep.subr.mxu0 0.0
    %2143 = vmatpush1.msra.mxu0 0.0
    %2144 = vmatprep.subr.mxu0 0.0
    %2145 = vmatpush1.msra.mxu0 0.0
    %2146 = vmatprep.subr.mxu0 0.0
    %2147 = vmatpush1.msra.mxu0 0.0
    %2148 = vmatprep.subr.mxu0 0.0
    %2149 = vmatpush1.msra.mxu0 0.0
    %2150 = vmatprep.subr.mxu0 0.0
    %2151 = vmatpush1.msra.mxu0 0.0
    %2152 = vmatprep.subr.mxu0 0.0
    %2153 = vmatpush1.msra.mxu0 0.0
    %2154 = vmatprep.subr.mxu0 0.0
    %2155 = vmatpush1.msra.mxu0 0.0
    %2156 = vmatprep.subr.mxu0 0.0
    %2157 = vmatpush1.msra.mxu0 0.0
    %2158 = vmatprep.subr.mxu0 0.0
    %2159 = vmatpush1.msra.mxu0 0.0
    %2160 = vmatprep.subr.mxu0 0.0
    %2161 = vmatpush1.msra.mxu0 0.0
    %2162 = vmatprep.subr.mxu0 0.0
    %2163 = vmatpush1.msra.mxu0 0.0
    %2164 = vmatprep.subr.mxu0 0.0
    %2165 = vmatpush1.msra.mxu0 0.0
    %2166 = vmatprep.mubr.f32.mxu0 0.0
    %2167 = vmatmul.mubr.f32.gmra.mrb[0].mxu0 %v2100
    %v2168 = vpop.f32.mrb[0].mxu0
    %v2169 = vadd.f32 0.0, %v2168
    %v2170 = vpop.f32.mrb[0].mxu0
    %2171 = vdwg.mxu0
    %v2173 = vsel %vm993, %v2083, 0
    %2175 = vmatprep.subr.mxu0 0.0
    %2176 = vmatpush1.msra.mxu0 %v2091
    %2177 = vmatprep.subr.mxu0 0.0
    %2178 = vmatpush1.msra.mxu0 %v2092
    %2179 = vmatprep.subr.mxu0 0.0
    %2180 = vmatpush1.msra.mxu0 %v2093
    %2181 = vmatprep.subr.mxu0 0.0
    %2182 = vmatpush1.msra.mxu0 %v2094
    %2183 = vmatprep.subr.mxu0 0.0
    %2184 = vmatpush1.msra.mxu0 0.0
    %2185 = vmatprep.subr.mxu0 0.0
    %2186 = vmatpush1.msra.mxu0 0.0
    %2187 = vmatprep.subr.mxu0 0.0
    %2188 = vmatpush1.msra.mxu0 0.0
    %2189 = vmatprep.subr.mxu0 0.0
    %2190 = vmatpush1.msra.mxu0 0.0
    %2191 = vmatprep.subr.mxu0 0.0
    %2192 = vmatpush1.msra.mxu0 0.0
    %2193 = vmatprep.subr.mxu0 0.0
    %2194 = vmatpush1.msra.mxu0 0.0
    %2195 = vmatprep.subr.mxu0 0.0
    %2196 = vmatpush1.msra.mxu0 0.0
    %2197 = vmatprep.subr.mxu0 0.0
    %2198 = vmatpush1.msra.mxu0 0.0
    %2199 = vmatprep.subr.mxu0 0.0
    %2200 = vmatpush1.msra.mxu0 0.0
    %2201 = vmatprep.subr.mxu0 0.0
    %2202 = vmatpush1.msra.mxu0 0.0
    %2203 = vmatprep.subr.mxu0 0.0
    %2204 = vmatpush1.msra.mxu0 0.0
    %2205 = vmatprep.subr.mxu0 0.0
    %2206 = vmatpush1.msra.mxu0 0.0
    %2207 = vmatprep.subr.mxu0 0.0
    %2208 = vmatpush1.msra.mxu0 0.0
    %2209 = vmatprep.subr.mxu0 0.0
    %2210 = vmatpush1.msra.mxu0 0.0
    %2211 = vmatprep.subr.mxu0 0.0
    %2212 = vmatpush1.msra.mxu0 0.0
    %2213 = vmatprep.subr.mxu0 0.0
    %2214 = vmatpush1.msra.mxu0 0.0
    %2215 = vmatprep.subr.mxu0 0.0
    %2216 = vmatpush1.msra.mxu0 0.0
    %2217 = vmatprep.subr.mxu0 0.0
    %2218 = vmatpush1.msra.mxu0 0.0
    %2219 = vmatprep.subr.mxu0 0.0
    %2220 = vmatpush1.msra.mxu0 0.0
    %2221 = vmatprep.subr.mxu0 0.0
    %2222 = vmatpush1.msra.mxu0 0.0
    %2223 = vmatprep.subr.mxu0 0.0
    %2224 = vmatpush1.msra.mxu0 0.0
    %2225 = vmatprep.subr.mxu0 0.0
    %2226 = vmatpush1.msra.mxu0 0.0
    %2227 = vmatprep.subr.mxu0 0.0
    %2228 = vmatpush1.msra.mxu0 0.0
    %2229 = vmatprep.subr.mxu0 0.0
    %2230 = vmatpush1.msra.mxu0 0.0
    %2231 = vmatprep.subr.mxu0 0.0
    %2232 = vmatpush1.msra.mxu0 0.0
    %2233 = vmatprep.subr.mxu0 0.0
    %2234 = vmatpush1.msra.mxu0 0.0
    %2235 = vmatprep.subr.mxu0 0.0
    %2236 = vmatpush1.msra.mxu0 0.0
    %2237 = vmatprep.subr.mxu0 0.0
    %2238 = vmatpush1.msra.mxu0 0.0
    %2239 = vmatprep.mubr.f32.mxu0 0.0
    %2240 = vmatmul.mubr.f32.gmra.mrb[0].mxu0 %v2173
    %v2241 = vpop.f32.mrb[0].mxu0
    %v2242 = vadd.f32 %v2169, %v2241
    %v2243 = vpop.f32.mrb[0].mxu0
    %2244 = vdwg.mxu0
    %v2245 = vld [vmem:[%s9] sm:$0x1]
    %v2247 = vlaneseq
    %v2248 = vshrl.u32 %v2247, 7
    %v2249 = vsub.s32 0, %v2248
    %v2250 = vrot.slane %v2245, %v2249
    %v2252 = vadd.f32 %v2242, %v2250
    %vm2253 = vcmp.ge.f32.partialorder %v2252, 0.0
    %v2254 = vmul.f32 %v2252, 0.01
    %v2255 = vsel %vm2253, %v2252, %v2254
    %s2256 = scalar_lea.vmem [#allocation2], 4
    %2257 = vst.msk [vmem:[%s2256] sm:$0xf] %vm1151, %v2255
    // Predicated region
    $region42: #{tpu_custom_call.1} parent=1 // pred_check
      _
    $region43: #{tpu_custom_call.1} parent=1 // pred_check_branch
      %2259 = sbr.rel (0) target = $region45
    $region44: #{tpu_custom_call.1} parent=1 // pred_region
      %s2261 = ssub.s32 128, 128
      %2262 = vsyncadd [#allocation3], %s2261
      %s2263 = sshll.u32 [#allocation2], 4
      %s2264 = int_to_ptr.vmem [resolvable:$true] %s2263
      %2269 = dma.vmem_to_hbm [thread:$0]  %s2264, 128, %s10, [#allocation3], 64, 64, 4
    $region45: #{tpu_custom_call.1} parent=1 // pred_fallthru
      _
    // Predicated region
    $region46: #{tpu_custom_call.1} parent=1 // pred_check
      _
    $region47: #{tpu_custom_call.1} parent=1 // pred_check_branch
      %2271 = sbr.rel (0) target = $region49
    $region48: #{tpu_custom_call.1} parent=1 // pred_region
      %2272 = dma.done [#allocation3], 128
    $region49: #{tpu_custom_call.1} parent=1 // pred_fallthru
      _
    %2273 = vsyncpa [#allocation3], 1

</llo_original>
